<compile_context>
chip_gen: v6e
topology: v6e:2x2x1
jax: 0.10.0
libtpu: 0.0.40
codegen_flags: <defaults>
</compile_context>

<pallas_src>
import jax
import jax.numpy as jnp
from jax.experimental import pallas as pl
from jax.experimental.pallas import tpu as pltpu

B, C, H, W = 2, 3, 16, 16     # batch, RGB channels, spatial
FEAT = 64                     # VGG-16 conv1_1: 3 -> 64 channels
KH = KW = 3                   # 3x3 kernel, padding=1
KDIM = KH * KW * C            # 27 im2col columns
KPAD = 32                     # padded contraction dim
BIAS_COL = KDIM               # all-ones column -> bias row of the RHS
M = B * H * W                 # rows per image-stack half (pred / targ)

# Tap order with the centre tap (dy=1, dx=1) FIRST, so the plain-pixel MSE can
# be read from lane-aligned columns 0:C of the patch slab.
TAP_OFFSETS = ((1, 1), (0, 0), (0, 1), (0, 2), (1, 0),
               (1, 2), (2, 0), (2, 1), (2, 2))
TAP_ORDER = tuple(dy * KW + dx for dy, dx in TAP_OFFSETS)

# Scalability guard: no-grid design assumes the whole working set (patches +
# weights + features) comfortably fits every generation's scoped VMEM.
_WORKSET_BYTES = 4 * (2 * M * KPAD + KPAD * FEAT + 2 * M * FEAT)
assert _WORKSET_BYTES < 8 * 1024 * 1024, (
    "working set too large for the no-grid kernel; tile the 2*M row axis")


def _combined_loss_kernel(patches_ref, w_ref, out_ref):
    """Single invocation: fused conv-as-matmul features + both MSE terms."""
    p = patches_ref[...]                                    # (2*M, KPAD) f32

    # ---- vgg_loss: one MXU matmul for pred AND targ features; bias is the
    # ones-column x bias-row term of the same matmul. -----------------------
    feats = jnp.maximum(
        jnp.dot(p, w_ref[...], preferred_element_type=jnp.float32),
        0.0)                                                # (2*M, FEAT) f32
    fd = feats[:M, :] - feats[M:, :]                        # sublane-aligned
    vgg_sq = jnp.sum(fd * fd)

    # ---- mse_loss: plain pixel MSE from the centre-tap columns (0:C) ------
    centre = p[:, :C]                                       # unpadded pixels
    pd = centre[:M, :] - centre[M:, :]
    mse_sq = jnp.sum(pd * pd)

    # ---- fold normalizers into one final scalar, single store -------------
    loss = (vgg_sq * (1.0 / float(B * FEAT * H * W))
            + mse_sq * (1.0 / float(B * C * H * W)))
    out_ref[...] = jnp.reshape(loss, (1, 1))


@jax.jit
def combined_loss(pred_nchw, targ_nchw, w_taps, bias):
    """pred/targ: (B, C, H, W) like PyTorch. Returns scalar f32 loss."""

    def im2col(x_nchw):
        # NCHW -> NHWC, zero-pad spatially, gather 3x3 shifted windows
        # (centre tap first).  Under jit this whole chain fuses into the
        # single XLA fusion that materializes `patches`.
        x = jnp.transpose(x_nchw, (0, 2, 3, 1)).astype(jnp.float32)
        xp = jnp.pad(x, ((0, 0), (1, 1), (1, 1), (0, 0)))   # (B, H+2, W+2, C)
        cols = [xp[:, dy:dy + H, dx:dx + W, :] for dy, dx in TAP_OFFSETS]
        return jnp.concatenate(cols, axis=-1).reshape(M, KDIM)

    # Stack pred + targ along M so the kernel does one shared-RHS matmul;
    # append one all-ones column (bias fold) and zero pad columns.
    patches = jnp.concatenate([im2col(pred_nchw), im2col(targ_nchw)], axis=0)
    patches = jnp.concatenate(
        [patches,
         jnp.ones((2 * M, 1), jnp.float32),                 # col 27 = 1.0
         jnp.zeros((2 * M, KPAD - KDIM - 1), jnp.float32)], # cols 28:32 = 0
        axis=1)                                             # (2*M, 32)

    # RHS: taps reordered to match the patch column order, bias in row 27,
    # remaining pad rows zero.
    w_flat = (w_taps[jnp.array(TAP_ORDER)]
              .reshape(KDIM, FEAT).astype(jnp.float32))
    w_full = jnp.concatenate(
        [w_flat,
         bias.reshape(1, FEAT).astype(jnp.float32),
         jnp.zeros((KPAD - KDIM - 1, FEAT), jnp.float32)],
        axis=0)                                             # (32, 64)

    out = pl.pallas_call(
        _combined_loss_kernel,
        out_shape=jax.ShapeDtypeStruct((1, 1), jnp.float32),
        in_specs=[pl.BlockSpec(memory_space=pltpu.MemorySpace.VMEM)] * 2,
        out_specs=pl.BlockSpec(memory_space=pltpu.MemorySpace.VMEM),
        cost_estimate=pl.CostEstimate(
            flops=2 * (2 * M) * KPAD * FEAT + 6 * (2 * M) * FEAT,
            transcendentals=0,
            bytes_accessed=4 * (2 * M * KPAD + KPAD * FEAT + 1)),
    )(patches, w_full)
    return out[0, 0]


def reference_loss(pred_nchw, targ_nchw, w_taps, bias):
    """Pure-JAX reference reproducing the same semantics."""
    w_hwio = w_taps.reshape(KH, KW, C, FEAT)

    def feats(x_nchw):
        x = jnp.transpose(x_nchw, (0, 2, 3, 1)).astype(jnp.float32)
        y = jax.lax.conv_general_dilated(
            x, w_hwio, window_strides=(1, 1), padding="SAME",
            dimension_numbers=("NHWC", "HWIO", "NHWC"))
        return jax.nn.relu(y + bias)

    vgg = jnp.mean((feats(pred_nchw) - feats(targ_nchw)) ** 2)
    mse = jnp.mean((pred_nchw.astype(jnp.float32)
                    - targ_nchw.astype(jnp.float32)) ** 2)
    return vgg + mse


if __name__ == "__main__":
    key = jax.random.PRNGKey(0)
    k1, k2 = jax.random.split(key)
    predicted = jax.random.normal(k1, (B, C, H, W), jnp.float32)
    target = jax.random.normal(k2, (B, C, H, W), jnp.float32)

    # deterministic "VGG conv1_1" parameters (synthetic, no checkpoint)
    wkey, bkey = jax.random.split(jax.random.PRNGKey(42))
    w_taps = (jax.random.normal(wkey, (KH * KW, C, FEAT), jnp.float32)
              * (1.0 / (C * KH * KW) ** 0.5))
    bias = jax.random.normal(bkey, (FEAT,), jnp.float32) * 0.1

    loss = jax.block_until_ready(combined_loss(predicted, target, w_taps, bias))
    ref = reference_loss(predicted, target, w_taps, bias)
    assert jnp.allclose(loss, ref, rtol=1e-4, atol=1e-4), (loss, ref)
    print("KERNEL_OK")
</pallas_src>

<mosaic_0001>
module attributes {stable_mosaic.version = 11 : i64} {
  func.func @_combined_loss_kernel(%arg0: memref<1024x32xf32, #tpu.memory_space<vmem>>, %arg1: memref<32x64xf32, #tpu.memory_space<vmem>>, %arg2: memref<1x1xf32, #tpu.memory_space<vmem>>) attributes {dimension_semantics = [], scalar_prefetch = 0 : i64, scratch_operands = 0 : i64, tpu.core_type = #tpu.core_type<tc>} {
    %c0 = arith.constant 0 : index
    %c0_0 = arith.constant 0 : index
    %0 = vector.load %arg0[%c0, %c0_0] : memref<1024x32xf32, #tpu.memory_space<vmem>>, vector<1024x32xf32>
    %c0_1 = arith.constant 0 : index
    %c0_2 = arith.constant 0 : index
    %1 = vector.load %arg1[%c0_1, %c0_2] : memref<32x64xf32, #tpu.memory_space<vmem>>, vector<32x64xf32>
    %cst = arith.constant dense<0.000000e+00> : vector<1024x64xf32>
    %2 = tpu.matmul %0, %1, %cst {dimension_numbers = #tpu.dot_dimension_numbers<[1], [0], [0], [1], [0, 0, 1, 1], [], []>} : vector<1024x32xf32>, vector<32x64xf32>, vector<1024x64xf32> -> vector<1024x64xf32>
    %cst_3 = arith.constant 0.000000e+00 : f32
    %3 = vector.broadcast %cst_3 : f32 to vector<1024x64xf32>
    %4 = arith.maximumf %2, %3 : vector<1024x64xf32>
    %5 = vector.extract_strided_slice %4 {offsets = [0, 0], sizes = [512, 64], strides = [1, 1]} : vector<1024x64xf32> to vector<512x64xf32>
    %6 = vector.extract_strided_slice %4 {offsets = [512, 0], sizes = [512, 64], strides = [1, 1]} : vector<1024x64xf32> to vector<512x64xf32>
    %7 = arith.subf %5, %6 : vector<512x64xf32>
    %8 = arith.mulf %7, %7 : vector<512x64xf32>
    %9 = vector.shape_cast %8 : vector<512x64xf32> to vector<1x512x64xf32>
    %cst_4 = arith.constant dense<0.000000e+00> : vector<1xf32>
    %10 = vector.multi_reduction <add>, %9, %cst_4 [1, 2] : vector<1x512x64xf32> to vector<1xf32>
    %11 = vector.shape_cast %10 : vector<1xf32> to vector<1x1x1xf32>
    %12 = vector.extract %11[0, 0, 0] : f32 from vector<1x1x1xf32>
    %13 = vector.extract_strided_slice %0 {offsets = [0, 0], sizes = [1024, 3], strides = [1, 1]} : vector<1024x32xf32> to vector<1024x3xf32>
    %14 = vector.extract_strided_slice %13 {offsets = [0, 0], sizes = [512, 3], strides = [1, 1]} : vector<1024x3xf32> to vector<512x3xf32>
    %15 = vector.extract_strided_slice %13 {offsets = [512, 0], sizes = [512, 3], strides = [1, 1]} : vector<1024x3xf32> to vector<512x3xf32>
    %16 = arith.subf %14, %15 : vector<512x3xf32>
    %17 = arith.mulf %16, %16 : vector<512x3xf32>
    %18 = vector.shape_cast %17 : vector<512x3xf32> to vector<1x512x3xf32>
    %cst_5 = arith.constant dense<0.000000e+00> : vector<1xf32>
    %19 = vector.multi_reduction <add>, %18, %cst_5 [1, 2] : vector<1x512x3xf32> to vector<1xf32>
    %20 = vector.shape_cast %19 : vector<1xf32> to vector<1x1x1xf32>
    %21 = vector.extract %20[0, 0, 0] : f32 from vector<1x1x1xf32>
    %cst_6 = arith.constant 3.05175781E-5 : f32
    %22 = arith.mulf %12, %cst_6 : f32
    %cst_7 = arith.constant 6.51041686E-4 : f32
    %23 = arith.mulf %21, %cst_7 : f32
    %24 = arith.addf %22, %23 : f32
    %25 = vector.broadcast %24 : f32 to vector<1x1xf32>
    %c0_8 = arith.constant 0 : index
    %c0_9 = arith.constant 0 : index
    %26 = vector.load %arg2[%c0_8, %c0_9] : memref<1x1xf32, #tpu.memory_space<vmem>>, vector<1x1xf32>
    tpu.vector_store %arg2[%c0_8, %c0_9], %25 {strides = array<i32>} : memref<1x1xf32, #tpu.memory_space<vmem>>, vector<1x1xf32>,
    return
  }
}

</mosaic_0001>

<llo_original>
// kernel: combined_loss.1
$region0: #{combined_loss.1}
  #allocation0 [shape = 'u32[]', space=smem, size = 0x4, offset = 0x4, fixed_abs, tag = 'smem constant byte address 0x4 - core index']
  #allocation1 [shape = 'u32[144,128]{1,0:T(1,128)}', space=vmem, size = 0x12000, scoped, tag = 'internal scratch']
  %s0 = inlined_call_operand.vmem [shape: f32[1024,32], index: 0, kind: input, shape index: {}]
  %s1 = inlined_call_operand.vmem [shape: f32[32,64], index: 1, kind: input, shape index: {}]
  %s2 = inlined_call_operand.hbm [shape: f32[1,1], index: 2, kind: output, shape index: {}]
  %s3 = sld [smem:[#allocation0]]
  $region18: #{combined_loss.1} parent=0
    _
  %s5 = ssub.s32 1, %s3
  %s6 = scalar_select 0, %s5, %s3
  $region1: #{combined_loss.1} parent=0
    #allocation2 [shape = 'u8[512]{0}', space=vmem, size = 0x400, scoped, tag = 'output window, operand 0, single buffered']
    #allocation3 [shape = 's32[1]{0}', space=sflag, size = 0x4, scoped, tag = 'scoped memory for combined_loss.1']
    %7 = vsyncpa [#allocation3], 0
    // Predicated region
    $region2: #{combined_loss.1} parent=1 // pred_check
      _
    $region3: #{combined_loss.1} parent=1 // pred_check_branch
      %9 = sbr.rel (0) target = $region5
    $region4: #{combined_loss.1} parent=1 // pred_region
      _
    $region5: #{combined_loss.1} parent=1 // pred_fallthru
      _
    // Predicated region
    $region6: #{combined_loss.1} parent=1 // pred_check
      _
    $region7: #{combined_loss.1} parent=1 // pred_check_branch
      %11 = sbr.rel (0) target = $region9
    $region8: #{combined_loss.1} parent=1 // pred_region
      _
    $region9: #{combined_loss.1} parent=1 // pred_fallthru
      _
    %v12 = vld [vmem:[%s0] sm:$0xff]
    %v13 = vld [vmem:[%s0 + $0x8] sm:$0xff]
    %v14 = vld [vmem:[%s0 + $0x10] sm:$0xff]
    %v15 = vld [vmem:[%s0 + $0x18] sm:$0xff]
    %v16 = vld [vmem:[%s0 + $0x20] sm:$0xff]
    %v17 = vld [vmem:[%s0 + $0x28] sm:$0xff]
    %v18 = vld [vmem:[%s0 + $0x30] sm:$0xff]
    %v19 = vld [vmem:[%s0 + $0x38] sm:$0xff]
    %v20 = vld [vmem:[%s0 + $0x40] sm:$0xff]
    %v21 = vld [vmem:[%s0 + $0x48] sm:$0xff]
    %v22 = vld [vmem:[%s0 + $0x50] sm:$0xff]
    %v23 = vld [vmem:[%s0 + $0x58] sm:$0xff]
    %v24 = vld [vmem:[%s0 + $0x60] sm:$0xff]
    %v25 = vld [vmem:[%s0 + $0x68] sm:$0xff]
    %v26 = vld [vmem:[%s0 + $0x70] sm:$0xff]
    %v27 = vld [vmem:[%s0 + $0x78] sm:$0xff]
    %v28 = vld [vmem:[%s0 + $0x80] sm:$0xff]
    %v29 = vld [vmem:[%s0 + $0x88] sm:$0xff]
    %v30 = vld [vmem:[%s0 + $0x90] sm:$0xff]
    %v31 = vld [vmem:[%s0 + $0x98] sm:$0xff]
    %v32 = vld [vmem:[%s0 + $0xa0] sm:$0xff]
    %v33 = vld [vmem:[%s0 + $0xa8] sm:$0xff]
    %v34 = vld [vmem:[%s0 + $0xb0] sm:$0xff]
    %v35 = vld [vmem:[%s0 + $0xb8] sm:$0xff]
    %v36 = vld [vmem:[%s0 + $0xc0] sm:$0xff]
    %v37 = vld [vmem:[%s0 + $0xc8] sm:$0xff]
    %v38 = vld [vmem:[%s0 + $0xd0] sm:$0xff]
    %v39 = vld [vmem:[%s0 + $0xd8] sm:$0xff]
    %v40 = vld [vmem:[%s0 + $0xe0] sm:$0xff]
    %v41 = vld [vmem:[%s0 + $0xe8] sm:$0xff]
    %v42 = vld [vmem:[%s0 + $0xf0] sm:$0xff]
    %v43 = vld [vmem:[%s0 + $0xf8] sm:$0xff]
    %v44 = vld [vmem:[%s0 + $0x100] sm:$0xff]
    %v45 = vld [vmem:[%s0 + $0x108] sm:$0xff]
    %v46 = vld [vmem:[%s0 + $0x110] sm:$0xff]
    %v47 = vld [vmem:[%s0 + $0x118] sm:$0xff]
    %v48 = vld [vmem:[%s0 + $0x120] sm:$0xff]
    %v49 = vld [vmem:[%s0 + $0x128] sm:$0xff]
    %v50 = vld [vmem:[%s0 + $0x130] sm:$0xff]
    %v51 = vld [vmem:[%s0 + $0x138] sm:$0xff]
    %v52 = vld [vmem:[%s0 + $0x140] sm:$0xff]
    %v53 = vld [vmem:[%s0 + $0x148] sm:$0xff]
    %v54 = vld [vmem:[%s0 + $0x150] sm:$0xff]
    %v55 = vld [vmem:[%s0 + $0x158] sm:$0xff]
    %v56 = vld [vmem:[%s0 + $0x160] sm:$0xff]
    %v57 = vld [vmem:[%s0 + $0x168] sm:$0xff]
    %v58 = vld [vmem:[%s0 + $0x170] sm:$0xff]
    %v59 = vld [vmem:[%s0 + $0x178] sm:$0xff]
    %v60 = vld [vmem:[%s0 + $0x180] sm:$0xff]
    %v61 = vld [vmem:[%s0 + $0x188] sm:$0xff]
    %v62 = vld [vmem:[%s0 + $0x190] sm:$0xff]
    %v63 = vld [vmem:[%s0 + $0x198] sm:$0xff]
    %v64 = vld [vmem:[%s0 + $0x1a0] sm:$0xff]
    %v65 = vld [vmem:[%s0 + $0x1a8] sm:$0xff]
    %v66 = vld [vmem:[%s0 + $0x1b0] sm:$0xff]
    %v67 = vld [vmem:[%s0 + $0x1b8] sm:$0xff]
    %v68 = vld [vmem:[%s0 + $0x1c0] sm:$0xff]
    %v69 = vld [vmem:[%s0 + $0x1c8] sm:$0xff]
    %v70 = vld [vmem:[%s0 + $0x1d0] sm:$0xff]
    %v71 = vld [vmem:[%s0 + $0x1d8] sm:$0xff]
    %v72 = vld [vmem:[%s0 + $0x1e0] sm:$0xff]
    %v73 = vld [vmem:[%s0 + $0x1e8] sm:$0xff]
    %v74 = vld [vmem:[%s0 + $0x1f0] sm:$0xff]
    %v75 = vld [vmem:[%s0 + $0x1f8] sm:$0xff]
    %v76 = vld [vmem:[%s0 + $0x200] sm:$0xff]
    %v77 = vld [vmem:[%s0 + $0x208] sm:$0xff]
    %v78 = vld [vmem:[%s0 + $0x210] sm:$0xff]
    %v79 = vld [vmem:[%s0 + $0x218] sm:$0xff]
    %v80 = vld [vmem:[%s0 + $0x220] sm:$0xff]
    %v81 = vld [vmem:[%s0 + $0x228] sm:$0xff]
    %v82 = vld [vmem:[%s0 + $0x230] sm:$0xff]
    %v83 = vld [vmem:[%s0 + $0x238] sm:$0xff]
    %v84 = vld [vmem:[%s0 + $0x240] sm:$0xff]
    %v85 = vld [vmem:[%s0 + $0x248] sm:$0xff]
    %v86 = vld [vmem:[%s0 + $0x250] sm:$0xff]
    %v87 = vld [vmem:[%s0 + $0x258] sm:$0xff]
    %v88 = vld [vmem:[%s0 + $0x260] sm:$0xff]
    %v89 = vld [vmem:[%s0 + $0x268] sm:$0xff]
    %v90 = vld [vmem:[%s0 + $0x270] sm:$0xff]
    %v91 = vld [vmem:[%s0 + $0x278] sm:$0xff]
    %v92 = vld [vmem:[%s0 + $0x280] sm:$0xff]
    %v93 = vld [vmem:[%s0 + $0x288] sm:$0xff]
    %v94 = vld [vmem:[%s0 + $0x290] sm:$0xff]
    %v95 = vld [vmem:[%s0 + $0x298] sm:$0xff]
    %v96 = vld [vmem:[%s0 + $0x2a0] sm:$0xff]
    %v97 = vld [vmem:[%s0 + $0x2a8] sm:$0xff]
    %v98 = vld [vmem:[%s0 + $0x2b0] sm:$0xff]
    %v99 = vld [vmem:[%s0 + $0x2b8] sm:$0xff]
    %v100 = vld [vmem:[%s0 + $0x2c0] sm:$0xff]
    %v101 = vld [vmem:[%s0 + $0x2c8] sm:$0xff]
    %v102 = vld [vmem:[%s0 + $0x2d0] sm:$0xff]
    %v103 = vld [vmem:[%s0 + $0x2d8] sm:$0xff]
    %v104 = vld [vmem:[%s0 + $0x2e0] sm:$0xff]
    %v105 = vld [vmem:[%s0 + $0x2e8] sm:$0xff]
    %v106 = vld [vmem:[%s0 + $0x2f0] sm:$0xff]
    %v107 = vld [vmem:[%s0 + $0x2f8] sm:$0xff]
    %v108 = vld [vmem:[%s0 + $0x300] sm:$0xff]
    %v109 = vld [vmem:[%s0 + $0x308] sm:$0xff]
    %v110 = vld [vmem:[%s0 + $0x310] sm:$0xff]
    %v111 = vld [vmem:[%s0 + $0x318] sm:$0xff]
    %v112 = vld [vmem:[%s0 + $0x320] sm:$0xff]
    %v113 = vld [vmem:[%s0 + $0x328] sm:$0xff]
    %v114 = vld [vmem:[%s0 + $0x330] sm:$0xff]
    %v115 = vld [vmem:[%s0 + $0x338] sm:$0xff]
    %v116 = vld [vmem:[%s0 + $0x340] sm:$0xff]
    %v117 = vld [vmem:[%s0 + $0x348] sm:$0xff]
    %v118 = vld [vmem:[%s0 + $0x350] sm:$0xff]
    %v119 = vld [vmem:[%s0 + $0x358] sm:$0xff]
    %v120 = vld [vmem:[%s0 + $0x360] sm:$0xff]
    %v121 = vld [vmem:[%s0 + $0x368] sm:$0xff]
    %v122 = vld [vmem:[%s0 + $0x370] sm:$0xff]
    %v123 = vld [vmem:[%s0 + $0x378] sm:$0xff]
    %v124 = vld [vmem:[%s0 + $0x380] sm:$0xff]
    %v125 = vld [vmem:[%s0 + $0x388] sm:$0xff]
    %v126 = vld [vmem:[%s0 + $0x390] sm:$0xff]
    %v127 = vld [vmem:[%s0 + $0x398] sm:$0xff]
    %v128 = vld [vmem:[%s0 + $0x3a0] sm:$0xff]
    %v129 = vld [vmem:[%s0 + $0x3a8] sm:$0xff]
    %v130 = vld [vmem:[%s0 + $0x3b0] sm:$0xff]
    %v131 = vld [vmem:[%s0 + $0x3b8] sm:$0xff]
    %v132 = vld [vmem:[%s0 + $0x3c0] sm:$0xff]
    %v133 = vld [vmem:[%s0 + $0x3c8] sm:$0xff]
    %v134 = vld [vmem:[%s0 + $0x3d0] sm:$0xff]
    %v135 = vld [vmem:[%s0 + $0x3d8] sm:$0xff]
    %v136 = vld [vmem:[%s0 + $0x3e0] sm:$0xff]
    %v137 = vld [vmem:[%s0 + $0x3e8] sm:$0xff]
    %v138 = vld [vmem:[%s0 + $0x3f0] sm:$0xff]
    %v139 = vld [vmem:[%s0 + $0x3f8] sm:$0xff]
    %v140 = vld [vmem:[%s1] sm:$0xff]
    %v141 = vld [vmem:[%s1 + $0x8] sm:$0xff]
    %v142 = vld [vmem:[%s1 + $0x10] sm:$0xff]
    %v143 = vld [vmem:[%s1 + $0x18] sm:$0xff]
    %vm144 = vcmask 261120
    %v146 = vsel %vm144, %v12, 0
    %v149 = vsel %vm144, %v13, 0
    %v152 = vsel %vm144, %v14, 0
    %v155 = vsel %vm144, %v15, 0
    %v158 = vsel %vm144, %v16, 0
    %v161 = vsel %vm144, %v17, 0
    %v164 = vsel %vm144, %v18, 0
    %v167 = vsel %vm144, %v19, 0
    %v170 = vsel %vm144, %v20, 0
    %v173 = vsel %vm144, %v21, 0
    %v176 = vsel %vm144, %v22, 0
    %v179 = vsel %vm144, %v23, 0
    %v182 = vsel %vm144, %v24, 0
    %v185 = vsel %vm144, %v25, 0
    %v188 = vsel %vm144, %v26, 0
    %v191 = vsel %vm144, %v27, 0
    %v194 = vsel %vm144, %v28, 0
    %v197 = vsel %vm144, %v29, 0
    %v200 = vsel %vm144, %v30, 0
    %v203 = vsel %vm144, %v31, 0
    %v206 = vsel %vm144, %v32, 0
    %v209 = vsel %vm144, %v33, 0
    %v212 = vsel %vm144, %v34, 0
    %v215 = vsel %vm144, %v35, 0
    %v218 = vsel %vm144, %v36, 0
    %v221 = vsel %vm144, %v37, 0
    %v224 = vsel %vm144, %v38, 0
    %v227 = vsel %vm144, %v39, 0
    %v230 = vsel %vm144, %v40, 0
    %v233 = vsel %vm144, %v41, 0
    %v236 = vsel %vm144, %v42, 0
    %v239 = vsel %vm144, %v43, 0
    %v242 = vsel %vm144, %v44, 0
    %v245 = vsel %vm144, %v45, 0
    %v248 = vsel %vm144, %v46, 0
    %v251 = vsel %vm144, %v47, 0
    %v254 = vsel %vm144, %v48, 0
    %v257 = vsel %vm144, %v49, 0
    %v260 = vsel %vm144, %v50, 0
    %v263 = vsel %vm144, %v51, 0
    %v266 = vsel %vm144, %v52, 0
    %v269 = vsel %vm144, %v53, 0
    %v272 = vsel %vm144, %v54, 0
    %v275 = vsel %vm144, %v55, 0
    %v278 = vsel %vm144, %v56, 0
    %v281 = vsel %vm144, %v57, 0
    %v284 = vsel %vm144, %v58, 0
    %v287 = vsel %vm144, %v59, 0
    %v290 = vsel %vm144, %v60, 0
    %v293 = vsel %vm144, %v61, 0
    %v296 = vsel %vm144, %v62, 0
    %v299 = vsel %vm144, %v63, 0
    %v302 = vsel %vm144, %v64, 0
    %v305 = vsel %vm144, %v65, 0
    %v308 = vsel %vm144, %v66, 0
    %v311 = vsel %vm144, %v67, 0
    %v314 = vsel %vm144, %v68, 0
    %v317 = vsel %vm144, %v69, 0
    %v320 = vsel %vm144, %v70, 0
    %v323 = vsel %vm144, %v71, 0
    %v326 = vsel %vm144, %v72, 0
    %v329 = vsel %vm144, %v73, 0
    %v332 = vsel %vm144, %v74, 0
    %v335 = vsel %vm144, %v75, 0
    %v338 = vsel %vm144, %v76, 0
    %v341 = vsel %vm144, %v77, 0
    %v344 = vsel %vm144, %v78, 0
    %v347 = vsel %vm144, %v79, 0
    %v350 = vsel %vm144, %v80, 0
    %v353 = vsel %vm144, %v81, 0
    %v356 = vsel %vm144, %v82, 0
    %v359 = vsel %vm144, %v83, 0
    %v362 = vsel %vm144, %v84, 0
    %v365 = vsel %vm144, %v85, 0
    %v368 = vsel %vm144, %v86, 0
    %v371 = vsel %vm144, %v87, 0
    %v374 = vsel %vm144, %v88, 0
    %v377 = vsel %vm144, %v89, 0
    %v380 = vsel %vm144, %v90, 0
    %v383 = vsel %vm144, %v91, 0
    %v386 = vsel %vm144, %v92, 0
    %v389 = vsel %vm144, %v93, 0
    %v392 = vsel %vm144, %v94, 0
    %v395 = vsel %vm144, %v95, 0
    %v398 = vsel %vm144, %v96, 0
    %v401 = vsel %vm144, %v97, 0
    %v404 = vsel %vm144, %v98, 0
    %v407 = vsel %vm144, %v99, 0
    %v410 = vsel %vm144, %v100, 0
    %v413 = vsel %vm144, %v101, 0
    %v416 = vsel %vm144, %v102, 0
    %v419 = vsel %vm144, %v103, 0
    %v422 = vsel %vm144, %v104, 0
    %v425 = vsel %vm144, %v105, 0
    %v428 = vsel %vm144, %v106, 0
    %v431 = vsel %vm144, %v107, 0
    %v434 = vsel %vm144, %v108, 0
    %v437 = vsel %vm144, %v109, 0
    %v440 = vsel %vm144, %v110, 0
    %v443 = vsel %vm144, %v111, 0
    %v446 = vsel %vm144, %v112, 0
    %v449 = vsel %vm144, %v113, 0
    %v452 = vsel %vm144, %v114, 0
    %v455 = vsel %vm144, %v115, 0
    %v458 = vsel %vm144, %v116, 0
    %v461 = vsel %vm144, %v117, 0
    %v464 = vsel %vm144, %v118, 0
    %v467 = vsel %vm144, %v119, 0
    %v470 = vsel %vm144, %v120, 0
    %v473 = vsel %vm144, %v121, 0
    %v476 = vsel %vm144, %v122, 0
    %v479 = vsel %vm144, %v123, 0
    %v482 = vsel %vm144, %v124, 0
    %v485 = vsel %vm144, %v125, 0
    %v488 = vsel %vm144, %v126, 0
    %v491 = vsel %vm144, %v127, 0
    %v494 = vsel %vm144, %v128, 0
    %v497 = vsel %vm144, %v129, 0
    %v500 = vsel %vm144, %v130, 0
    %v503 = vsel %vm144, %v131, 0
    %v506 = vsel %vm144, %v132, 0
    %v509 = vsel %vm144, %v133, 0
    %v512 = vsel %vm144, %v134, 0
    %v515 = vsel %vm144, %v135, 0
    %v518 = vsel %vm144, %v136, 0
    %v521 = vsel %vm144, %v137, 0
    %v524 = vsel %vm144, %v138, 0
    %v527 = vsel %vm144, %v139, 0
    %529 = vmatprep.subr.mxu0 0.0
    %530 = vmatpush1.msra.mxu0 0.0
    %531 = vmatprep.subr.mxu0 0.0
    %532 = vmatpush1.msra.mxu0 0.0
    %533 = vmatprep.subr.mxu0 0.0
    %534 = vmatpush1.msra.mxu0 0.0
    %535 = vmatprep.subr.mxu0 0.0
    %536 = vmatpush1.msra.mxu0 0.0
    %537 = vmatprep.subr.mxu0 0.0
    %538 = vmatpush1.msra.mxu0 0.0
    %539 = vmatprep.subr.mxu0 0.0
    %540 = vmatpush1.msra.mxu0 0.0
    %541 = vmatprep.subr.mxu0 0.0
    %542 = vmatpush1.msra.mxu0 0.0
    %543 = vmatprep.subr.mxu0 0.0
    %544 = vmatpush1.msra.mxu0 0.0
    %545 = vmatprep.subr.mxu0 0.0
    %546 = vmatpush1.msra.mxu0 0.0
    %547 = vmatprep.subr.mxu0 0.0
    %548 = vmatpush1.msra.mxu0 0.0
    %549 = vmatprep.subr.mxu0 0.0
    %550 = vmatpush1.msra.mxu0 0.0
    %551 = vmatprep.subr.mxu0 0.0
    %552 = vmatpush1.msra.mxu0 0.0
    %553 = vmatprep.subr.mxu0 0.0
    %554 = vmatpush1.msra.mxu0 %v143
    %555 = vmatprep.subr.mxu0 0.0
    %556 = vmatpush1.msra.mxu0 %v142
    %557 = vmatprep.subr.mxu0 0.0
    %558 = vmatpush1.msra.mxu0 %v141
    %559 = vmatprep.subr.mxu0 0.0
    %560 = vmatpush1.msra.mxu0 %v140
    %561 = vmatprep.subr.mxu0 0.0
    %562 = vmatpush2.msra.mxu0 0.0
    %563 = vmatprep.subr.mxu0 0.0
    %564 = vmatpush2.msra.mxu0 0.0
    %565 = vmatprep.subr.mxu0 0.0
    %566 = vmatpush2.msra.mxu0 0.0
    %567 = vmatprep.subr.mxu0 0.0
    %568 = vmatpush2.msra.mxu0 0.0
    %569 = vmatprep.subr.mxu0 0.0
    %570 = vmatpush2.msra.mxu0 0.0
    %571 = vmatprep.subr.mxu0 0.0
    %572 = vmatpush2.msra.mxu0 0.0
    %573 = vmatprep.subr.mxu0 0.0
    %574 = vmatpush2.msra.mxu0 0.0
    %575 = vmatprep.subr.mxu0 0.0
    %576 = vmatpush2.msra.mxu0 0.0
    %577 = vmatprep.subr.mxu0 0.0
    %578 = vmatpush2.msra.mxu0 0.0
    %579 = vmatprep.subr.mxu0 0.0
    %580 = vmatpush2.msra.mxu0 0.0
    %581 = vmatprep.subr.mxu0 0.0
    %582 = vmatpush2.msra.mxu0 0.0
    %583 = vmatprep.subr.mxu0 0.0
    %584 = vmatpush2.msra.mxu0 0.0
    %585 = vmatprep.subr.mxu0 0.0
    %586 = vmatpush2.msra.mxu0 0.0
    %587 = vmatprep.subr.mxu0 0.0
    %588 = vmatpush2.msra.mxu0 0.0
    %589 = vmatprep.subr.mxu0 0.0
    %590 = vmatpush2.msra.mxu0 0.0
    %591 = vmatprep.subr.mxu0 0.0
    %592 = vmatpush2.msra.mxu0 0.0
    %593 = vmatprep.mubr.f32.mxu0 0.0
    %594 = vmatmul.mubr.f32.gmra.mxu0 %v146
    %v595 = vpop.f32.mrf.mxu0
    %v596 = vadd.f32 0.0, %v595
    %v597 = vpop.f32.mrf.mxu0
    %598 = vmatprep.mubr.f32.mxu0 0.0
    %599 = vmatmul.mubr.f32.gmra.mxu0 %v149
    %v600 = vpop.f32.mrf.mxu0
    %v601 = vadd.f32 0.0, %v600
    %v602 = vpop.f32.mrf.mxu0
    %603 = vmatprep.mubr.f32.mxu0 0.0
    %604 = vmatmul.mubr.f32.gmra.mxu0 %v152
    %v605 = vpop.f32.mrf.mxu0
    %v606 = vadd.f32 0.0, %v605
    %v607 = vpop.f32.mrf.mxu0
    %608 = vmatprep.mubr.f32.mxu0 0.0
    %609 = vmatmul.mubr.f32.gmra.mxu0 %v155
    %v610 = vpop.f32.mrf.mxu0
    %v611 = vadd.f32 0.0, %v610
    %v612 = vpop.f32.mrf.mxu0
    %613 = vmatprep.mubr.f32.mxu0 0.0
    %614 = vmatmul.mubr.f32.gmra.mxu0 %v158
    %v615 = vpop.f32.mrf.mxu0
    %v616 = vadd.f32 0.0, %v615
    %v617 = vpop.f32.mrf.mxu0
    %618 = vmatprep.mubr.f32.mxu0 0.0
    %619 = vmatmul.mubr.f32.gmra.mxu0 %v161
    %v620 = vpop.f32.mrf.mxu0
    %v621 = vadd.f32 0.0, %v620
    %v622 = vpop.f32.mrf.mxu0
    %623 = vmatprep.mubr.f32.mxu0 0.0
    %624 = vmatmul.mubr.f32.gmra.mxu0 %v164
    %v625 = vpop.f32.mrf.mxu0
    %v626 = vadd.f32 0.0, %v625
    %v627 = vpop.f32.mrf.mxu0
    %628 = vmatprep.mubr.f32.mxu0 0.0
    %629 = vmatmul.mubr.f32.gmra.mxu0 %v167
    %v630 = vpop.f32.mrf.mxu0
    %v631 = vadd.f32 0.0, %v630
    %v632 = vpop.f32.mrf.mxu0
    %633 = vmatprep.mubr.f32.mxu0 0.0
    %634 = vmatmul.mubr.f32.gmra.mxu0 %v170
    %v635 = vpop.f32.mrf.mxu0
    %v636 = vadd.f32 0.0, %v635
    %v637 = vpop.f32.mrf.mxu0
    %638 = vmatprep.mubr.f32.mxu0 0.0
    %639 = vmatmul.mubr.f32.gmra.mxu0 %v173
    %v640 = vpop.f32.mrf.mxu0
    %v641 = vadd.f32 0.0, %v640
    %v642 = vpop.f32.mrf.mxu0
    %643 = vmatprep.mubr.f32.mxu0 0.0
    %644 = vmatmul.mubr.f32.gmra.mxu0 %v176
    %v645 = vpop.f32.mrf.mxu0
    %v646 = vadd.f32 0.0, %v645
    %v647 = vpop.f32.mrf.mxu0
    %648 = vmatprep.mubr.f32.mxu0 0.0
    %649 = vmatmul.mubr.f32.gmra.mxu0 %v179
    %v650 = vpop.f32.mrf.mxu0
    %v651 = vadd.f32 0.0, %v650
    %v652 = vpop.f32.mrf.mxu0
    %653 = vmatprep.mubr.f32.mxu0 0.0
    %654 = vmatmul.mubr.f32.gmra.mxu0 %v182
    %v655 = vpop.f32.mrf.mxu0
    %v656 = vadd.f32 0.0, %v655
    %v657 = vpop.f32.mrf.mxu0
    %658 = vmatprep.mubr.f32.mxu0 0.0
    %659 = vmatmul.mubr.f32.gmra.mxu0 %v185
    %v660 = vpop.f32.mrf.mxu0
    %v661 = vadd.f32 0.0, %v660
    %v662 = vpop.f32.mrf.mxu0
    %663 = vmatprep.mubr.f32.mxu0 0.0
    %664 = vmatmul.mubr.f32.gmra.mxu0 %v188
    %v665 = vpop.f32.mrf.mxu0
    %v666 = vadd.f32 0.0, %v665
    %v667 = vpop.f32.mrf.mxu0
    %668 = vmatprep.mubr.f32.mxu0 0.0
    %669 = vmatmul.mubr.f32.gmra.mxu0 %v191
    %v670 = vpop.f32.mrf.mxu0
    %v671 = vadd.f32 0.0, %v670
    %v672 = vpop.f32.mrf.mxu0
    %673 = vmatprep.mubr.f32.mxu0 0.0
    %674 = vmatmul.mubr.f32.gmra.mxu0 %v194
    %v675 = vpop.f32.mrf.mxu0
    %v676 = vadd.f32 0.0, %v675
    %v677 = vpop.f32.mrf.mxu0
    %678 = vmatprep.mubr.f32.mxu0 0.0
    %679 = vmatmul.mubr.f32.gmra.mxu0 %v197
    %v680 = vpop.f32.mrf.mxu0
    %v681 = vadd.f32 0.0, %v680
    %v682 = vpop.f32.mrf.mxu0
    %683 = vmatprep.mubr.f32.mxu0 0.0
    %684 = vmatmul.mubr.f32.gmra.mxu0 %v200
    %v685 = vpop.f32.mrf.mxu0
    %v686 = vadd.f32 0.0, %v685
    %v687 = vpop.f32.mrf.mxu0
    %688 = vmatprep.mubr.f32.mxu0 0.0
    %689 = vmatmul.mubr.f32.gmra.mxu0 %v203
    %v690 = vpop.f32.mrf.mxu0
    %v691 = vadd.f32 0.0, %v690
    %v692 = vpop.f32.mrf.mxu0
    %693 = vmatprep.mubr.f32.mxu0 0.0
    %694 = vmatmul.mubr.f32.gmra.mxu0 %v206
    %v695 = vpop.f32.mrf.mxu0
    %v696 = vadd.f32 0.0, %v695
    %v697 = vpop.f32.mrf.mxu0
    %698 = vmatprep.mubr.f32.mxu0 0.0
    %699 = vmatmul.mubr.f32.gmra.mxu0 %v209
    %v700 = vpop.f32.mrf.mxu0
    %v701 = vadd.f32 0.0, %v700
    %v702 = vpop.f32.mrf.mxu0
    %703 = vmatprep.mubr.f32.mxu0 0.0
    %704 = vmatmul.mubr.f32.gmra.mxu0 %v212
    %v705 = vpop.f32.mrf.mxu0
    %v706 = vadd.f32 0.0, %v705
    %v707 = vpop.f32.mrf.mxu0
    %708 = vmatprep.mubr.f32.mxu0 0.0
    %709 = vmatmul.mubr.f32.gmra.mxu0 %v215
    %v710 = vpop.f32.mrf.mxu0
    %v711 = vadd.f32 0.0, %v710
    %v712 = vpop.f32.mrf.mxu0
    %713 = vmatprep.mubr.f32.mxu0 0.0
    %714 = vmatmul.mubr.f32.gmra.mxu0 %v218
    %v715 = vpop.f32.mrf.mxu0
    %v716 = vadd.f32 0.0, %v715
    %v717 = vpop.f32.mrf.mxu0
    %718 = vmatprep.mubr.f32.mxu0 0.0
    %719 = vmatmul.mubr.f32.gmra.mxu0 %v221
    %v720 = vpop.f32.mrf.mxu0
    %v721 = vadd.f32 0.0, %v720
    %v722 = vpop.f32.mrf.mxu0
    %723 = vmatprep.mubr.f32.mxu0 0.0
    %724 = vmatmul.mubr.f32.gmra.mxu0 %v224
    %v725 = vpop.f32.mrf.mxu0
    %v726 = vadd.f32 0.0, %v725
    %v727 = vpop.f32.mrf.mxu0
    %728 = vmatprep.mubr.f32.mxu0 0.0
    %729 = vmatmul.mubr.f32.gmra.mxu0 %v227
    %v730 = vpop.f32.mrf.mxu0
    %v731 = vadd.f32 0.0, %v730
    %v732 = vpop.f32.mrf.mxu0
    %733 = vmatprep.mubr.f32.mxu0 0.0
    %734 = vmatmul.mubr.f32.gmra.mxu0 %v230
    %v735 = vpop.f32.mrf.mxu0
    %v736 = vadd.f32 0.0, %v735
    %v737 = vpop.f32.mrf.mxu0
    %738 = vmatprep.mubr.f32.mxu0 0.0
    %739 = vmatmul.mubr.f32.gmra.mxu0 %v233
    %v740 = vpop.f32.mrf.mxu0
    %v741 = vadd.f32 0.0, %v740
    %v742 = vpop.f32.mrf.mxu0
    %743 = vmatprep.mubr.f32.mxu0 0.0
    %744 = vmatmul.mubr.f32.gmra.mxu0 %v236
    %v745 = vpop.f32.mrf.mxu0
    %v746 = vadd.f32 0.0, %v745
    %v747 = vpop.f32.mrf.mxu0
    %748 = vmatprep.mubr.f32.mxu0 0.0
    %749 = vmatmul.mubr.f32.gmra.mxu0 %v239
    %v750 = vpop.f32.mrf.mxu0
    %v751 = vadd.f32 0.0, %v750
    %v752 = vpop.f32.mrf.mxu0
    %753 = vmatprep.mubr.f32.mxu0 0.0
    %754 = vmatmul.mubr.f32.gmra.mxu0 %v242
    %v755 = vpop.f32.mrf.mxu0
    %v756 = vadd.f32 0.0, %v755
    %v757 = vpop.f32.mrf.mxu0
    %758 = vmatprep.mubr.f32.mxu0 0.0
    %759 = vmatmul.mubr.f32.gmra.mxu0 %v245
    %v760 = vpop.f32.mrf.mxu0
    %v761 = vadd.f32 0.0, %v760
    %v762 = vpop.f32.mrf.mxu0
    %763 = vmatprep.mubr.f32.mxu0 0.0
    %764 = vmatmul.mubr.f32.gmra.mxu0 %v248
    %v765 = vpop.f32.mrf.mxu0
    %v766 = vadd.f32 0.0, %v765
    %v767 = vpop.f32.mrf.mxu0
    %768 = vmatprep.mubr.f32.mxu0 0.0
    %769 = vmatmul.mubr.f32.gmra.mxu0 %v251
    %v770 = vpop.f32.mrf.mxu0
    %v771 = vadd.f32 0.0, %v770
    %v772 = vpop.f32.mrf.mxu0
    %773 = vmatprep.mubr.f32.mxu0 0.0
    %774 = vmatmul.mubr.f32.gmra.mxu0 %v254
    %v775 = vpop.f32.mrf.mxu0
    %v776 = vadd.f32 0.0, %v775
    %v777 = vpop.f32.mrf.mxu0
    %778 = vmatprep.mubr.f32.mxu0 0.0
    %779 = vmatmul.mubr.f32.gmra.mxu0 %v257
    %v780 = vpop.f32.mrf.mxu0
    %v781 = vadd.f32 0.0, %v780
    %v782 = vpop.f32.mrf.mxu0
    %783 = vmatprep.mubr.f32.mxu0 0.0
    %784 = vmatmul.mubr.f32.gmra.mxu0 %v260
    %v785 = vpop.f32.mrf.mxu0
    %v786 = vadd.f32 0.0, %v785
    %v787 = vpop.f32.mrf.mxu0
    %788 = vmatprep.mubr.f32.mxu0 0.0
    %789 = vmatmul.mubr.f32.gmra.mxu0 %v263
    %v790 = vpop.f32.mrf.mxu0
    %v791 = vadd.f32 0.0, %v790
    %v792 = vpop.f32.mrf.mxu0
    %793 = vmatprep.mubr.f32.mxu0 0.0
    %794 = vmatmul.mubr.f32.gmra.mxu0 %v266
    %v795 = vpop.f32.mrf.mxu0
    %v796 = vadd.f32 0.0, %v795
    %v797 = vpop.f32.mrf.mxu0
    %798 = vmatprep.mubr.f32.mxu0 0.0
    %799 = vmatmul.mubr.f32.gmra.mxu0 %v269
    %v800 = vpop.f32.mrf.mxu0
    %v801 = vadd.f32 0.0, %v800
    %v802 = vpop.f32.mrf.mxu0
    %803 = vmatprep.mubr.f32.mxu0 0.0
    %804 = vmatmul.mubr.f32.gmra.mxu0 %v272
    %v805 = vpop.f32.mrf.mxu0
    %v806 = vadd.f32 0.0, %v805
    %v807 = vpop.f32.mrf.mxu0
    %808 = vmatprep.mubr.f32.mxu0 0.0
    %809 = vmatmul.mubr.f32.gmra.mxu0 %v275
    %v810 = vpop.f32.mrf.mxu0
    %v811 = vadd.f32 0.0, %v810
    %v812 = vpop.f32.mrf.mxu0
    %813 = vmatprep.mubr.f32.mxu0 0.0
    %814 = vmatmul.mubr.f32.gmra.mxu0 %v278
    %v815 = vpop.f32.mrf.mxu0
    %v816 = vadd.f32 0.0, %v815
    %v817 = vpop.f32.mrf.mxu0
    %818 = vmatprep.mubr.f32.mxu0 0.0
    %819 = vmatmul.mubr.f32.gmra.mxu0 %v281
    %v820 = vpop.f32.mrf.mxu0
    %v821 = vadd.f32 0.0, %v820
    %v822 = vpop.f32.mrf.mxu0
    %823 = vmatprep.mubr.f32.mxu0 0.0
    %824 = vmatmul.mubr.f32.gmra.mxu0 %v284
    %v825 = vpop.f32.mrf.mxu0
    %v826 = vadd.f32 0.0, %v825
    %v827 = vpop.f32.mrf.mxu0
    %828 = vmatprep.mubr.f32.mxu0 0.0
    %829 = vmatmul.mubr.f32.gmra.mxu0 %v287
    %v830 = vpop.f32.mrf.mxu0
    %v831 = vadd.f32 0.0, %v830
    %v832 = vpop.f32.mrf.mxu0
    %833 = vmatprep.mubr.f32.mxu0 0.0
    %834 = vmatmul.mubr.f32.gmra.mxu0 %v290
    %v835 = vpop.f32.mrf.mxu0
    %v836 = vadd.f32 0.0, %v835
    %v837 = vpop.f32.mrf.mxu0
    %838 = vmatprep.mubr.f32.mxu0 0.0
    %839 = vmatmul.mubr.f32.gmra.mxu0 %v293
    %v840 = vpop.f32.mrf.mxu0
    %v841 = vadd.f32 0.0, %v840
    %v842 = vpop.f32.mrf.mxu0
    %843 = vmatprep.mubr.f32.mxu0 0.0
    %844 = vmatmul.mubr.f32.gmra.mxu0 %v296
    %v845 = vpop.f32.mrf.mxu0
    %v846 = vadd.f32 0.0, %v845
    %v847 = vpop.f32.mrf.mxu0
    %848 = vmatprep.mubr.f32.mxu0 0.0
    %849 = vmatmul.mubr.f32.gmra.mxu0 %v299
    %v850 = vpop.f32.mrf.mxu0
    %v851 = vadd.f32 0.0, %v850
    %v852 = vpop.f32.mrf.mxu0
    %853 = vmatprep.mubr.f32.mxu0 0.0
    %854 = vmatmul.mubr.f32.gmra.mxu0 %v302
    %v855 = vpop.f32.mrf.mxu0
    %v856 = vadd.f32 0.0, %v855
    %v857 = vpop.f32.mrf.mxu0
    %858 = vmatprep.mubr.f32.mxu0 0.0
    %859 = vmatmul.mubr.f32.gmra.mxu0 %v305
    %v860 = vpop.f32.mrf.mxu0
    %v861 = vadd.f32 0.0, %v860
    %v862 = vpop.f32.mrf.mxu0
    %863 = vmatprep.mubr.f32.mxu0 0.0
    %864 = vmatmul.mubr.f32.gmra.mxu0 %v308
    %v865 = vpop.f32.mrf.mxu0
    %v866 = vadd.f32 0.0, %v865
    %v867 = vpop.f32.mrf.mxu0
    %868 = vmatprep.mubr.f32.mxu0 0.0
    %869 = vmatmul.mubr.f32.gmra.mxu0 %v311
    %v870 = vpop.f32.mrf.mxu0
    %v871 = vadd.f32 0.0, %v870
    %v872 = vpop.f32.mrf.mxu0
    %873 = vmatprep.mubr.f32.mxu0 0.0
    %874 = vmatmul.mubr.f32.gmra.mxu0 %v314
    %v875 = vpop.f32.mrf.mxu0
    %v876 = vadd.f32 0.0, %v875
    %v877 = vpop.f32.mrf.mxu0
    %878 = vmatprep.mubr.f32.mxu0 0.0
    %879 = vmatmul.mubr.f32.gmra.mxu0 %v317
    %v880 = vpop.f32.mrf.mxu0
    %v881 = vadd.f32 0.0, %v880
    %v882 = vpop.f32.mrf.mxu0
    %883 = vmatprep.mubr.f32.mxu0 0.0
    %884 = vmatmul.mubr.f32.gmra.mxu0 %v320
    %v885 = vpop.f32.mrf.mxu0
    %v886 = vadd.f32 0.0, %v885
    %v887 = vpop.f32.mrf.mxu0
    %888 = vmatprep.mubr.f32.mxu0 0.0
    %889 = vmatmul.mubr.f32.gmra.mxu0 %v323
    %v890 = vpop.f32.mrf.mxu0
    %v891 = vadd.f32 0.0, %v890
    %v892 = vpop.f32.mrf.mxu0
    %893 = vmatprep.mubr.f32.mxu0 0.0
    %894 = vmatmul.mubr.f32.gmra.mxu0 %v326
    %v895 = vpop.f32.mrf.mxu0
    %v896 = vadd.f32 0.0, %v895
    %v897 = vpop.f32.mrf.mxu0
    %898 = vmatprep.mubr.f32.mxu0 0.0
    %899 = vmatmul.mubr.f32.gmra.mxu0 %v329
    %v900 = vpop.f32.mrf.mxu0
    %v901 = vadd.f32 0.0, %v900
    %v902 = vpop.f32.mrf.mxu0
    %903 = vmatprep.mubr.f32.mxu0 0.0
    %904 = vmatmul.mubr.f32.gmra.mxu0 %v332
    %v905 = vpop.f32.mrf.mxu0
    %v906 = vadd.f32 0.0, %v905
    %v907 = vpop.f32.mrf.mxu0
    %908 = vmatprep.mubr.f32.mxu0 0.0
    %909 = vmatmul.mubr.f32.gmra.mxu0 %v335
    %v910 = vpop.f32.mrf.mxu0
    %v911 = vadd.f32 0.0, %v910
    %v912 = vpop.f32.mrf.mxu0
    %913 = vmatprep.mubr.f32.mxu0 0.0
    %914 = vmatmul.mubr.f32.gmra.mxu0 %v338
    %v915 = vpop.f32.mrf.mxu0
    %v916 = vadd.f32 0.0, %v915
    %v917 = vpop.f32.mrf.mxu0
    %918 = vmatprep.mubr.f32.mxu0 0.0
    %919 = vmatmul.mubr.f32.gmra.mxu0 %v341
    %v920 = vpop.f32.mrf.mxu0
    %v921 = vadd.f32 0.0, %v920
    %v922 = vpop.f32.mrf.mxu0
    %923 = vmatprep.mubr.f32.mxu0 0.0
    %924 = vmatmul.mubr.f32.gmra.mxu0 %v344
    %v925 = vpop.f32.mrf.mxu0
    %v926 = vadd.f32 0.0, %v925
    %v927 = vpop.f32.mrf.mxu0
    %928 = vmatprep.mubr.f32.mxu0 0.0
    %929 = vmatmul.mubr.f32.gmra.mxu0 %v347
    %v930 = vpop.f32.mrf.mxu0
    %v931 = vadd.f32 0.0, %v930
    %v932 = vpop.f32.mrf.mxu0
    %933 = vmatprep.mubr.f32.mxu0 0.0
    %934 = vmatmul.mubr.f32.gmra.mxu0 %v350
    %v935 = vpop.f32.mrf.mxu0
    %v936 = vadd.f32 0.0, %v935
    %v937 = vpop.f32.mrf.mxu0
    %938 = vmatprep.mubr.f32.mxu0 0.0
    %939 = vmatmul.mubr.f32.gmra.mxu0 %v353
    %v940 = vpop.f32.mrf.mxu0
    %v941 = vadd.f32 0.0, %v940
    %v942 = vpop.f32.mrf.mxu0
    %943 = vmatprep.mubr.f32.mxu0 0.0
    %944 = vmatmul.mubr.f32.gmra.mxu0 %v356
    %v945 = vpop.f32.mrf.mxu0
    %v946 = vadd.f32 0.0, %v945
    %v947 = vpop.f32.mrf.mxu0
    %948 = vmatprep.mubr.f32.mxu0 0.0
    %949 = vmatmul.mubr.f32.gmra.mxu0 %v359
    %v950 = vpop.f32.mrf.mxu0
    %v951 = vadd.f32 0.0, %v950
    %v952 = vpop.f32.mrf.mxu0
    %953 = vmatprep.mubr.f32.mxu0 0.0
    %954 = vmatmul.mubr.f32.gmra.mxu0 %v362
    %v955 = vpop.f32.mrf.mxu0
    %v956 = vadd.f32 0.0, %v955
    %v957 = vpop.f32.mrf.mxu0
    %958 = vmatprep.mubr.f32.mxu0 0.0
    %959 = vmatmul.mubr.f32.gmra.mxu0 %v365
    %v960 = vpop.f32.mrf.mxu0
    %v961 = vadd.f32 0.0, %v960
    %v962 = vpop.f32.mrf.mxu0
    %963 = vmatprep.mubr.f32.mxu0 0.0
    %964 = vmatmul.mubr.f32.gmra.mxu0 %v368
    %v965 = vpop.f32.mrf.mxu0
    %v966 = vadd.f32 0.0, %v965
    %v967 = vpop.f32.mrf.mxu0
    %968 = vmatprep.mubr.f32.mxu0 0.0
    %969 = vmatmul.mubr.f32.gmra.mxu0 %v371
    %v970 = vpop.f32.mrf.mxu0
    %v971 = vadd.f32 0.0, %v970
    %v972 = vpop.f32.mrf.mxu0
    %973 = vmatprep.mubr.f32.mxu0 0.0
    %974 = vmatmul.mubr.f32.gmra.mxu0 %v374
    %v975 = vpop.f32.mrf.mxu0
    %v976 = vadd.f32 0.0, %v975
    %v977 = vpop.f32.mrf.mxu0
    %978 = vmatprep.mubr.f32.mxu0 0.0
    %979 = vmatmul.mubr.f32.gmra.mxu0 %v377
    %v980 = vpop.f32.mrf.mxu0
    %v981 = vadd.f32 0.0, %v980
    %v982 = vpop.f32.mrf.mxu0
    %983 = vmatprep.mubr.f32.mxu0 0.0
    %984 = vmatmul.mubr.f32.gmra.mxu0 %v380
    %v985 = vpop.f32.mrf.mxu0
    %v986 = vadd.f32 0.0, %v985
    %v987 = vpop.f32.mrf.mxu0
    %988 = vmatprep.mubr.f32.mxu0 0.0
    %989 = vmatmul.mubr.f32.gmra.mxu0 %v383
    %v990 = vpop.f32.mrf.mxu0
    %v991 = vadd.f32 0.0, %v990
    %v992 = vpop.f32.mrf.mxu0
    %993 = vmatprep.mubr.f32.mxu0 0.0
    %994 = vmatmul.mubr.f32.gmra.mxu0 %v386
    %v995 = vpop.f32.mrf.mxu0
    %v996 = vadd.f32 0.0, %v995
    %v997 = vpop.f32.mrf.mxu0
    %998 = vmatprep.mubr.f32.mxu0 0.0
    %999 = vmatmul.mubr.f32.gmra.mxu0 %v389
    %v1000 = vpop.f32.mrf.mxu0
    %v1001 = vadd.f32 0.0, %v1000
    %v1002 = vpop.f32.mrf.mxu0
    %1003 = vmatprep.mubr.f32.mxu0 0.0
    %1004 = vmatmul.mubr.f32.gmra.mxu0 %v392
    %v1005 = vpop.f32.mrf.mxu0
    %v1006 = vadd.f32 0.0, %v1005
    %v1007 = vpop.f32.mrf.mxu0
    %1008 = vmatprep.mubr.f32.mxu0 0.0
    %1009 = vmatmul.mubr.f32.gmra.mxu0 %v395
    %v1010 = vpop.f32.mrf.mxu0
    %v1011 = vadd.f32 0.0, %v1010
    %v1012 = vpop.f32.mrf.mxu0
    %1013 = vmatprep.mubr.f32.mxu0 0.0
    %1014 = vmatmul.mubr.f32.gmra.mxu0 %v398
    %v1015 = vpop.f32.mrf.mxu0
    %v1016 = vadd.f32 0.0, %v1015
    %v1017 = vpop.f32.mrf.mxu0
    %1018 = vmatprep.mubr.f32.mxu0 0.0
    %1019 = vmatmul.mubr.f32.gmra.mxu0 %v401
    %v1020 = vpop.f32.mrf.mxu0
    %v1021 = vadd.f32 0.0, %v1020
    %v1022 = vpop.f32.mrf.mxu0
    %1023 = vmatprep.mubr.f32.mxu0 0.0
    %1024 = vmatmul.mubr.f32.gmra.mxu0 %v404
    %v1025 = vpop.f32.mrf.mxu0
    %v1026 = vadd.f32 0.0, %v1025
    %v1027 = vpop.f32.mrf.mxu0
    %1028 = vmatprep.mubr.f32.mxu0 0.0
    %1029 = vmatmul.mubr.f32.gmra.mxu0 %v407
    %v1030 = vpop.f32.mrf.mxu0
    %v1031 = vadd.f32 0.0, %v1030
    %v1032 = vpop.f32.mrf.mxu0
    %1033 = vmatprep.mubr.f32.mxu0 0.0
    %1034 = vmatmul.mubr.f32.gmra.mxu0 %v410
    %v1035 = vpop.f32.mrf.mxu0
    %v1036 = vadd.f32 0.0, %v1035
    %v1037 = vpop.f32.mrf.mxu0
    %1038 = vmatprep.mubr.f32.mxu0 0.0
    %1039 = vmatmul.mubr.f32.gmra.mxu0 %v413
    %v1040 = vpop.f32.mrf.mxu0
    %v1041 = vadd.f32 0.0, %v1040
    %v1042 = vpop.f32.mrf.mxu0
    %1043 = vmatprep.mubr.f32.mxu0 0.0
    %1044 = vmatmul.mubr.f32.gmra.mxu0 %v416
    %v1045 = vpop.f32.mrf.mxu0
    %v1046 = vadd.f32 0.0, %v1045
    %v1047 = vpop.f32.mrf.mxu0
    %1048 = vmatprep.mubr.f32.mxu0 0.0
    %1049 = vmatmul.mubr.f32.gmra.mxu0 %v419
    %v1050 = vpop.f32.mrf.mxu0
    %v1051 = vadd.f32 0.0, %v1050
    %v1052 = vpop.f32.mrf.mxu0
    %1053 = vmatprep.mubr.f32.mxu0 0.0
    %1054 = vmatmul.mubr.f32.gmra.mxu0 %v422
    %v1055 = vpop.f32.mrf.mxu0
    %v1056 = vadd.f32 0.0, %v1055
    %v1057 = vpop.f32.mrf.mxu0
    %1058 = vmatprep.mubr.f32.mxu0 0.0
    %1059 = vmatmul.mubr.f32.gmra.mxu0 %v425
    %v1060 = vpop.f32.mrf.mxu0
    %v1061 = vadd.f32 0.0, %v1060
    %v1062 = vpop.f32.mrf.mxu0
    %1063 = vmatprep.mubr.f32.mxu0 0.0
    %1064 = vmatmul.mubr.f32.gmra.mxu0 %v428
    %v1065 = vpop.f32.mrf.mxu0
    %v1066 = vadd.f32 0.0, %v1065
    %v1067 = vpop.f32.mrf.mxu0
    %1068 = vmatprep.mubr.f32.mxu0 0.0
    %1069 = vmatmul.mubr.f32.gmra.mxu0 %v431
    %v1070 = vpop.f32.mrf.mxu0
    %v1071 = vadd.f32 0.0, %v1070
    %v1072 = vpop.f32.mrf.mxu0
    %1073 = vmatprep.mubr.f32.mxu0 0.0
    %1074 = vmatmul.mubr.f32.gmra.mxu0 %v434
    %v1075 = vpop.f32.mrf.mxu0
    %v1076 = vadd.f32 0.0, %v1075
    %v1077 = vpop.f32.mrf.mxu0
    %1078 = vmatprep.mubr.f32.mxu0 0.0
    %1079 = vmatmul.mubr.f32.gmra.mxu0 %v437
    %v1080 = vpop.f32.mrf.mxu0
    %v1081 = vadd.f32 0.0, %v1080
    %v1082 = vpop.f32.mrf.mxu0
    %1083 = vmatprep.mubr.f32.mxu0 0.0
    %1084 = vmatmul.mubr.f32.gmra.mxu0 %v440
    %v1085 = vpop.f32.mrf.mxu0
    %v1086 = vadd.f32 0.0, %v1085
    %v1087 = vpop.f32.mrf.mxu0
    %1088 = vmatprep.mubr.f32.mxu0 0.0
    %1089 = vmatmul.mubr.f32.gmra.mxu0 %v443
    %v1090 = vpop.f32.mrf.mxu0
    %v1091 = vadd.f32 0.0, %v1090
    %v1092 = vpop.f32.mrf.mxu0
    %1093 = vmatprep.mubr.f32.mxu0 0.0
    %1094 = vmatmul.mubr.f32.gmra.mxu0 %v446
    %v1095 = vpop.f32.mrf.mxu0
    %v1096 = vadd.f32 0.0, %v1095
    %v1097 = vpop.f32.mrf.mxu0
    %1098 = vmatprep.mubr.f32.mxu0 0.0
    %1099 = vmatmul.mubr.f32.gmra.mxu0 %v449
    %v1100 = vpop.f32.mrf.mxu0
    %v1101 = vadd.f32 0.0, %v1100
    %v1102 = vpop.f32.mrf.mxu0
    %1103 = vmatprep.mubr.f32.mxu0 0.0
    %1104 = vmatmul.mubr.f32.gmra.mxu0 %v452
    %v1105 = vpop.f32.mrf.mxu0
    %v1106 = vadd.f32 0.0, %v1105
    %v1107 = vpop.f32.mrf.mxu0
    %1108 = vmatprep.mubr.f32.mxu0 0.0
    %1109 = vmatmul.mubr.f32.gmra.mxu0 %v455
    %v1110 = vpop.f32.mrf.mxu0
    %v1111 = vadd.f32 0.0, %v1110
    %v1112 = vpop.f32.mrf.mxu0
    %1113 = vmatprep.mubr.f32.mxu0 0.0
    %1114 = vmatmul.mubr.f32.gmra.mxu0 %v458
    %v1115 = vpop.f32.mrf.mxu0
    %v1116 = vadd.f32 0.0, %v1115
    %v1117 = vpop.f32.mrf.mxu0
    %1118 = vmatprep.mubr.f32.mxu0 0.0
    %1119 = vmatmul.mubr.f32.gmra.mxu0 %v461
    %v1120 = vpop.f32.mrf.mxu0
    %v1121 = vadd.f32 0.0, %v1120
    %v1122 = vpop.f32.mrf.mxu0
    %1123 = vmatprep.mubr.f32.mxu0 0.0
    %1124 = vmatmul.mubr.f32.gmra.mxu0 %v464
    %v1125 = vpop.f32.mrf.mxu0
    %v1126 = vadd.f32 0.0, %v1125
    %v1127 = vpop.f32.mrf.mxu0
    %1128 = vmatprep.mubr.f32.mxu0 0.0
    %1129 = vmatmul.mubr.f32.gmra.mxu0 %v467
    %v1130 = vpop.f32.mrf.mxu0
    %v1131 = vadd.f32 0.0, %v1130
    %v1132 = vpop.f32.mrf.mxu0
    %1133 = vmatprep.mubr.f32.mxu0 0.0
    %1134 = vmatmul.mubr.f32.gmra.mxu0 %v470
    %v1135 = vpop.f32.mrf.mxu0
    %v1136 = vadd.f32 0.0, %v1135
    %v1137 = vpop.f32.mrf.mxu0
    %1138 = vmatprep.mubr.f32.mxu0 0.0
    %1139 = vmatmul.mubr.f32.gmra.mxu0 %v473
    %v1140 = vpop.f32.mrf.mxu0
    %v1141 = vadd.f32 0.0, %v1140
    %v1142 = vpop.f32.mrf.mxu0
    %1143 = vmatprep.mubr.f32.mxu0 0.0
    %1144 = vmatmul.mubr.f32.gmra.mxu0 %v476
    %v1145 = vpop.f32.mrf.mxu0
    %v1146 = vadd.f32 0.0, %v1145
    %v1147 = vpop.f32.mrf.mxu0
    %1148 = vmatprep.mubr.f32.mxu0 0.0
    %1149 = vmatmul.mubr.f32.gmra.mxu0 %v479
    %v1150 = vpop.f32.mrf.mxu0
    %v1151 = vadd.f32 0.0, %v1150
    %v1152 = vpop.f32.mrf.mxu0
    %1153 = vmatprep.mubr.f32.mxu0 0.0
    %1154 = vmatmul.mubr.f32.gmra.mxu0 %v482
    %v1155 = vpop.f32.mrf.mxu0
    %v1156 = vadd.f32 0.0, %v1155
    %v1157 = vpop.f32.mrf.mxu0
    %1158 = vmatprep.mubr.f32.mxu0 0.0
    %1159 = vmatmul.mubr.f32.gmra.mxu0 %v485
    %v1160 = vpop.f32.mrf.mxu0
    %v1161 = vadd.f32 0.0, %v1160
    %v1162 = vpop.f32.mrf.mxu0
    %1163 = vmatprep.mubr.f32.mxu0 0.0
    %1164 = vmatmul.mubr.f32.gmra.mxu0 %v488
    %v1165 = vpop.f32.mrf.mxu0
    %v1166 = vadd.f32 0.0, %v1165
    %v1167 = vpop.f32.mrf.mxu0
    %1168 = vmatprep.mubr.f32.mxu0 0.0
    %1169 = vmatmul.mubr.f32.gmra.mxu0 %v491
    %v1170 = vpop.f32.mrf.mxu0
    %v1171 = vadd.f32 0.0, %v1170
    %v1172 = vpop.f32.mrf.mxu0
    %1173 = vmatprep.mubr.f32.mxu0 0.0
    %1174 = vmatmul.mubr.f32.gmra.mxu0 %v494
    %v1175 = vpop.f32.mrf.mxu0
    %v1176 = vadd.f32 0.0, %v1175
    %v1177 = vpop.f32.mrf.mxu0
    %1178 = vmatprep.mubr.f32.mxu0 0.0
    %1179 = vmatmul.mubr.f32.gmra.mxu0 %v497
    %v1180 = vpop.f32.mrf.mxu0
    %v1181 = vadd.f32 0.0, %v1180
    %v1182 = vpop.f32.mrf.mxu0
    %1183 = vmatprep.mubr.f32.mxu0 0.0
    %1184 = vmatmul.mubr.f32.gmra.mxu0 %v500
    %v1185 = vpop.f32.mrf.mxu0
    %v1186 = vadd.f32 0.0, %v1185
    %v1187 = vpop.f32.mrf.mxu0
    %1188 = vmatprep.mubr.f32.mxu0 0.0
    %1189 = vmatmul.mubr.f32.gmra.mxu0 %v503
    %v1190 = vpop.f32.mrf.mxu0
    %v1191 = vadd.f32 0.0, %v1190
    %v1192 = vpop.f32.mrf.mxu0
    %1193 = vmatprep.mubr.f32.mxu0 0.0
    %1194 = vmatmul.mubr.f32.gmra.mxu0 %v506
    %v1195 = vpop.f32.mrf.mxu0
    %v1196 = vadd.f32 0.0, %v1195
    %v1197 = vpop.f32.mrf.mxu0
    %1198 = vmatprep.mubr.f32.mxu0 0.0
    %1199 = vmatmul.mubr.f32.gmra.mxu0 %v509
    %v1200 = vpop.f32.mrf.mxu0
    %v1201 = vadd.f32 0.0, %v1200
    %v1202 = vpop.f32.mrf.mxu0
    %1203 = vmatprep.mubr.f32.mxu0 0.0
    %1204 = vmatmul.mubr.f32.gmra.mxu0 %v512
    %v1205 = vpop.f32.mrf.mxu0
    %v1206 = vadd.f32 0.0, %v1205
    %v1207 = vpop.f32.mrf.mxu0
    %1208 = vmatprep.mubr.f32.mxu0 0.0
    %1209 = vmatmul.mubr.f32.gmra.mxu0 %v515
    %v1210 = vpop.f32.mrf.mxu0
    %v1211 = vadd.f32 0.0, %v1210
    %v1212 = vpop.f32.mrf.mxu0
    %1213 = vmatprep.mubr.f32.mxu0 0.0
    %1214 = vmatmul.mubr.f32.gmra.mxu0 %v518
    %v1215 = vpop.f32.mrf.mxu0
    %v1216 = vadd.f32 0.0, %v1215
    %v1217 = vpop.f32.mrf.mxu0
    %1218 = vmatprep.mubr.f32.mxu0 0.0
    %1219 = vmatmul.mubr.f32.gmra.mxu0 %v521
    %v1220 = vpop.f32.mrf.mxu0
    %v1221 = vadd.f32 0.0, %v1220
    %v1222 = vpop.f32.mrf.mxu0
    %1223 = vmatprep.mubr.f32.mxu0 0.0
    %1224 = vmatmul.mubr.f32.gmra.mxu0 %v524
    %v1225 = vpop.f32.mrf.mxu0
    %v1226 = vadd.f32 0.0, %v1225
    %v1227 = vpop.f32.mrf.mxu0
    %1228 = vmatprep.mubr.f32.mxu0 0.0
    %1229 = vmatmul.mubr.f32.gmra.mxu0 %v527
    %v1230 = vpop.f32.mrf.mxu0
    %v1231 = vadd.f32 0.0, %v1230
    %v1232 = vpop.f32.mrf.mxu0
    %1233 = vdwg.mxu0
    %v1234 = vmax.f32 %v596, 0.0
    %v1235 = vmax.f32 %v601, 0.0
    %v1236 = vmax.f32 %v606, 0.0
    %v1237 = vmax.f32 %v611, 0.0
    %v1238 = vmax.f32 %v616, 0.0
    %v1239 = vmax.f32 %v621, 0.0
    %v1240 = vmax.f32 %v626, 0.0
    %v1241 = vmax.f32 %v631, 0.0
    %v1242 = vmax.f32 %v636, 0.0
    %v1243 = vmax.f32 %v641, 0.0
    %v1244 = vmax.f32 %v646, 0.0
    %v1245 = vmax.f32 %v651, 0.0
    %v1246 = vmax.f32 %v656, 0.0
    %v1247 = vmax.f32 %v661, 0.0
    %v1248 = vmax.f32 %v666, 0.0
    %v1249 = vmax.f32 %v671, 0.0
    %v1250 = vmax.f32 %v676, 0.0
    %v1251 = vmax.f32 %v681, 0.0
    %v1252 = vmax.f32 %v686, 0.0
    %v1253 = vmax.f32 %v691, 0.0
    %v1254 = vmax.f32 %v696, 0.0
    %v1255 = vmax.f32 %v701, 0.0
    %v1256 = vmax.f32 %v706, 0.0
    %v1257 = vmax.f32 %v711, 0.0
    %v1258 = vmax.f32 %v716, 0.0
    %v1259 = vmax.f32 %v721, 0.0
    %v1260 = vmax.f32 %v726, 0.0
    %v1261 = vmax.f32 %v731, 0.0
    %v1262 = vmax.f32 %v736, 0.0
    %v1263 = vmax.f32 %v741, 0.0
    %v1264 = vmax.f32 %v746, 0.0
    %v1265 = vmax.f32 %v751, 0.0
    %v1266 = vmax.f32 %v756, 0.0
    %v1267 = vmax.f32 %v761, 0.0
    %v1268 = vmax.f32 %v766, 0.0
    %v1269 = vmax.f32 %v771, 0.0
    %v1270 = vmax.f32 %v776, 0.0
    %v1271 = vmax.f32 %v781, 0.0
    %v1272 = vmax.f32 %v786, 0.0
    %v1273 = vmax.f32 %v791, 0.0
    %v1274 = vmax.f32 %v796, 0.0
    %v1275 = vmax.f32 %v801, 0.0
    %v1276 = vmax.f32 %v806, 0.0
    %v1277 = vmax.f32 %v811, 0.0
    %v1278 = vmax.f32 %v816, 0.0
    %v1279 = vmax.f32 %v821, 0.0
    %v1280 = vmax.f32 %v826, 0.0
    %v1281 = vmax.f32 %v831, 0.0
    %v1282 = vmax.f32 %v836, 0.0
    %v1283 = vmax.f32 %v841, 0.0
    %v1284 = vmax.f32 %v846, 0.0
    %v1285 = vmax.f32 %v851, 0.0
    %v1286 = vmax.f32 %v856, 0.0
    %v1287 = vmax.f32 %v861, 0.0
    %v1288 = vmax.f32 %v866, 0.0
    %v1289 = vmax.f32 %v871, 0.0
    %v1290 = vmax.f32 %v876, 0.0
    %v1291 = vmax.f32 %v881, 0.0
    %v1292 = vmax.f32 %v886, 0.0
    %v1293 = vmax.f32 %v891, 0.0
    %v1294 = vmax.f32 %v896, 0.0
    %v1295 = vmax.f32 %v901, 0.0
    %v1296 = vmax.f32 %v906, 0.0
    %v1297 = vmax.f32 %v911, 0.0
    %v1298 = vmax.f32 %v916, 0.0
    %v1299 = vmax.f32 %v921, 0.0
    %v1300 = vmax.f32 %v926, 0.0
    %v1301 = vmax.f32 %v931, 0.0
    %v1302 = vmax.f32 %v936, 0.0
    %v1303 = vmax.f32 %v941, 0.0
    %v1304 = vmax.f32 %v946, 0.0
    %v1305 = vmax.f32 %v951, 0.0
    %v1306 = vmax.f32 %v956, 0.0
    %v1307 = vmax.f32 %v961, 0.0
    %v1308 = vmax.f32 %v966, 0.0
    %v1309 = vmax.f32 %v971, 0.0
    %v1310 = vmax.f32 %v976, 0.0
    %v1311 = vmax.f32 %v981, 0.0
    %v1312 = vmax.f32 %v986, 0.0
    %v1313 = vmax.f32 %v991, 0.0
    %v1314 = vmax.f32 %v996, 0.0
    %v1315 = vmax.f32 %v1001, 0.0
    %v1316 = vmax.f32 %v1006, 0.0
    %v1317 = vmax.f32 %v1011, 0.0
    %v1318 = vmax.f32 %v1016, 0.0
    %v1319 = vmax.f32 %v1021, 0.0
    %v1320 = vmax.f32 %v1026, 0.0
    %v1321 = vmax.f32 %v1031, 0.0
    %v1322 = vmax.f32 %v1036, 0.0
    %v1323 = vmax.f32 %v1041, 0.0
    %v1324 = vmax.f32 %v1046, 0.0
    %v1325 = vmax.f32 %v1051, 0.0
    %v1326 = vmax.f32 %v1056, 0.0
    %v1327 = vmax.f32 %v1061, 0.0
    %v1328 = vmax.f32 %v1066, 0.0
    %v1329 = vmax.f32 %v1071, 0.0
    %v1330 = vmax.f32 %v1076, 0.0
    %v1331 = vmax.f32 %v1081, 0.0
    %v1332 = vmax.f32 %v1086, 0.0
    %v1333 = vmax.f32 %v1091, 0.0
    %v1334 = vmax.f32 %v1096, 0.0
    %v1335 = vmax.f32 %v1101, 0.0
    %v1336 = vmax.f32 %v1106, 0.0
    %v1337 = vmax.f32 %v1111, 0.0
    %v1338 = vmax.f32 %v1116, 0.0
    %v1339 = vmax.f32 %v1121, 0.0
    %v1340 = vmax.f32 %v1126, 0.0
    %v1341 = vmax.f32 %v1131, 0.0
    %v1342 = vmax.f32 %v1136, 0.0
    %v1343 = vmax.f32 %v1141, 0.0
    %v1344 = vmax.f32 %v1146, 0.0
    %v1345 = vmax.f32 %v1151, 0.0
    %v1346 = vmax.f32 %v1156, 0.0
    %v1347 = vmax.f32 %v1161, 0.0
    %v1348 = vmax.f32 %v1166, 0.0
    %v1349 = vmax.f32 %v1171, 0.0
    %v1350 = vmax.f32 %v1176, 0.0
    %v1351 = vmax.f32 %v1181, 0.0
    %v1352 = vmax.f32 %v1186, 0.0
    %v1353 = vmax.f32 %v1191, 0.0
    %v1354 = vmax.f32 %v1196, 0.0
    %v1355 = vmax.f32 %v1201, 0.0
    %v1356 = vmax.f32 %v1206, 0.0
    %v1357 = vmax.f32 %v1211, 0.0
    %v1358 = vmax.f32 %v1216, 0.0
    %v1359 = vmax.f32 %v1221, 0.0
    %v1360 = vmax.f32 %v1226, 0.0
    %v1361 = vmax.f32 %v1231, 0.0
    %v1362 = vsub.f32 %v1234, %v1298
    %v1363 = vsub.f32 %v1235, %v1299
    %v1364 = vsub.f32 %v1236, %v1300
    %v1365 = vsub.f32 %v1237, %v1301
    %v1366 = vsub.f32 %v1238, %v1302
    %v1367 = vsub.f32 %v1239, %v1303
    %v1368 = vsub.f32 %v1240, %v1304
    %v1369 = vsub.f32 %v1241, %v1305
    %v1370 = vsub.f32 %v1242, %v1306
    %v1371 = vsub.f32 %v1243, %v1307
    %v1372 = vsub.f32 %v1244, %v1308
    %v1373 = vsub.f32 %v1245, %v1309
    %v1374 = vsub.f32 %v1246, %v1310
    %v1375 = vsub.f32 %v1247, %v1311
    %v1376 = vsub.f32 %v1248, %v1312
    %v1377 = vsub.f32 %v1249, %v1313
    %v1378 = vsub.f32 %v1250, %v1314
    %v1379 = vsub.f32 %v1251, %v1315
    %v1380 = vsub.f32 %v1252, %v1316
    %v1381 = vsub.f32 %v1253, %v1317
    %v1382 = vsub.f32 %v1254, %v1318
    %v1383 = vsub.f32 %v1255, %v1319
    %v1384 = vsub.f32 %v1256, %v1320
    %v1385 = vsub.f32 %v1257, %v1321
    %v1386 = vsub.f32 %v1258, %v1322
    %v1387 = vsub.f32 %v1259, %v1323
    %v1388 = vsub.f32 %v1260, %v1324
    %v1389 = vsub.f32 %v1261, %v1325
    %v1390 = vsub.f32 %v1262, %v1326
    %v1391 = vsub.f32 %v1263, %v1327
    %v1392 = vsub.f32 %v1264, %v1328
    %v1393 = vsub.f32 %v1265, %v1329
    %v1394 = vsub.f32 %v1266, %v1330
    %v1395 = vsub.f32 %v1267, %v1331
    %v1396 = vsub.f32 %v1268, %v1332
    %v1397 = vsub.f32 %v1269, %v1333
    %v1398 = vsub.f32 %v1270, %v1334
    %v1399 = vsub.f32 %v1271, %v1335
    %v1400 = vsub.f32 %v1272, %v1336
    %v1401 = vsub.f32 %v1273, %v1337
    %v1402 = vsub.f32 %v1274, %v1338
    %v1403 = vsub.f32 %v1275, %v1339
    %v1404 = vsub.f32 %v1276, %v1340
    %v1405 = vsub.f32 %v1277, %v1341
    %v1406 = vsub.f32 %v1278, %v1342
    %v1407 = vsub.f32 %v1279, %v1343
    %v1408 = vsub.f32 %v1280, %v1344
    %v1409 = vsub.f32 %v1281, %v1345
    %v1410 = vsub.f32 %v1282, %v1346
    %v1411 = vsub.f32 %v1283, %v1347
    %v1412 = vsub.f32 %v1284, %v1348
    %v1413 = vsub.f32 %v1285, %v1349
    %v1414 = vsub.f32 %v1286, %v1350
    %v1415 = vsub.f32 %v1287, %v1351
    %v1416 = vsub.f32 %v1288, %v1352
    %v1417 = vsub.f32 %v1289, %v1353
    %v1418 = vsub.f32 %v1290, %v1354
    %v1419 = vsub.f32 %v1291, %v1355
    %v1420 = vsub.f32 %v1292, %v1356
    %v1421 = vsub.f32 %v1293, %v1357
    %v1422 = vsub.f32 %v1294, %v1358
    %v1423 = vsub.f32 %v1295, %v1359
    %v1424 = vsub.f32 %v1296, %v1360
    %v1425 = vsub.f32 %v1297, %v1361
    %v1426 = vmul.f32 %v1362, %v1362
    %v1427 = vmul.f32 %v1363, %v1363
    %v1428 = vmul.f32 %v1364, %v1364
    %v1429 = vmul.f32 %v1365, %v1365
    %v1430 = vmul.f32 %v1366, %v1366
    %v1431 = vmul.f32 %v1367, %v1367
    %v1432 = vmul.f32 %v1368, %v1368
    %v1433 = vmul.f32 %v1369, %v1369
    %v1434 = vmul.f32 %v1370, %v1370
    %v1435 = vmul.f32 %v1371, %v1371
    %v1436 = vmul.f32 %v1372, %v1372
    %v1437 = vmul.f32 %v1373, %v1373
    %v1438 = vmul.f32 %v1374, %v1374
    %v1439 = vmul.f32 %v1375, %v1375
    %v1440 = vmul.f32 %v1376, %v1376
    %v1441 = vmul.f32 %v1377, %v1377
    %v1442 = vmul.f32 %v1378, %v1378
    %v1443 = vmul.f32 %v1379, %v1379
    %v1444 = vmul.f32 %v1380, %v1380
    %v1445 = vmul.f32 %v1381, %v1381
    %v1446 = vmul.f32 %v1382, %v1382
    %v1447 = vmul.f32 %v1383, %v1383
    %v1448 = vmul.f32 %v1384, %v1384
    %v1449 = vmul.f32 %v1385, %v1385
    %v1450 = vmul.f32 %v1386, %v1386
    %v1451 = vmul.f32 %v1387, %v1387
    %v1452 = vmul.f32 %v1388, %v1388
    %v1453 = vmul.f32 %v1389, %v1389
    %v1454 = vmul.f32 %v1390, %v1390
    %v1455 = vmul.f32 %v1391, %v1391
    %v1456 = vmul.f32 %v1392, %v1392
    %v1457 = vmul.f32 %v1393, %v1393
    %v1458 = vmul.f32 %v1394, %v1394
    %v1459 = vmul.f32 %v1395, %v1395
    %v1460 = vmul.f32 %v1396, %v1396
    %v1461 = vmul.f32 %v1397, %v1397
    %v1462 = vmul.f32 %v1398, %v1398
    %v1463 = vmul.f32 %v1399, %v1399
    %v1464 = vmul.f32 %v1400, %v1400
    %v1465 = vmul.f32 %v1401, %v1401
    %v1466 = vmul.f32 %v1402, %v1402
    %v1467 = vmul.f32 %v1403, %v1403
    %v1468 = vmul.f32 %v1404, %v1404
    %v1469 = vmul.f32 %v1405, %v1405
    %v1470 = vmul.f32 %v1406, %v1406
    %v1471 = vmul.f32 %v1407, %v1407
    %v1472 = vmul.f32 %v1408, %v1408
    %v1473 = vmul.f32 %v1409, %v1409
    %v1474 = vmul.f32 %v1410, %v1410
    %v1475 = vmul.f32 %v1411, %v1411
    %v1476 = vmul.f32 %v1412, %v1412
    %v1477 = vmul.f32 %v1413, %v1413
    %v1478 = vmul.f32 %v1414, %v1414
    %v1479 = vmul.f32 %v1415, %v1415
    %v1480 = vmul.f32 %v1416, %v1416
    %v1481 = vmul.f32 %v1417, %v1417
    %v1482 = vmul.f32 %v1418, %v1418
    %v1483 = vmul.f32 %v1419, %v1419
    %v1484 = vmul.f32 %v1420, %v1420
    %v1485 = vmul.f32 %v1421, %v1421
    %v1486 = vmul.f32 %v1422, %v1422
    %v1487 = vmul.f32 %v1423, %v1423
    %v1488 = vmul.f32 %v1424, %v1424
    %v1489 = vmul.f32 %v1425, %v1425
    %vm1490 = vcmask 523264
    %v1491 = vsel %vm1490, %v1426, 0.0
    %v1492 = vsel %vm1490, %v1427, 0.0
    %v1493 = vadd.f32 %v1491, %v1492
    %v1494 = vsel %vm1490, %v1428, 0.0
    %v1495 = vadd.f32 %v1493, %v1494
    %v1496 = vsel %vm1490, %v1429, 0.0
    %v1497 = vadd.f32 %v1495, %v1496
    %v1498 = vsel %vm1490, %v1430, 0.0
    %v1499 = vadd.f32 %v1497, %v1498
    %v1500 = vsel %vm1490, %v1431, 0.0
    %v1501 = vadd.f32 %v1499, %v1500
    %v1502 = vsel %vm1490, %v1432, 0.0
    %v1503 = vadd.f32 %v1501, %v1502
    %v1504 = vsel %vm1490, %v1433, 0.0
    %v1505 = vadd.f32 %v1503, %v1504
    %v1506 = vsel %vm1490, %v1434, 0.0
    %v1507 = vadd.f32 %v1505, %v1506
    %v1508 = vsel %vm1490, %v1435, 0.0
    %v1509 = vadd.f32 %v1507, %v1508
    %v1510 = vsel %vm1490, %v1436, 0.0
    %v1511 = vadd.f32 %v1509, %v1510
    %v1512 = vsel %vm1490, %v1437, 0.0
    %v1513 = vadd.f32 %v1511, %v1512
    %v1514 = vsel %vm1490, %v1438, 0.0
    %v1515 = vadd.f32 %v1513, %v1514
    %v1516 = vsel %vm1490, %v1439, 0.0
    %v1517 = vadd.f32 %v1515, %v1516
    %v1518 = vsel %vm1490, %v1440, 0.0
    %v1519 = vadd.f32 %v1517, %v1518
    %v1520 = vsel %vm1490, %v1441, 0.0
    %v1521 = vadd.f32 %v1519, %v1520
    %v1522 = vsel %vm1490, %v1442, 0.0
    %v1523 = vadd.f32 %v1521, %v1522
    %v1524 = vsel %vm1490, %v1443, 0.0
    %v1525 = vadd.f32 %v1523, %v1524
    %v1526 = vsel %vm1490, %v1444, 0.0
    %v1527 = vadd.f32 %v1525, %v1526
    %v1528 = vsel %vm1490, %v1445, 0.0
    %v1529 = vadd.f32 %v1527, %v1528
    %v1530 = vsel %vm1490, %v1446, 0.0
    %v1531 = vadd.f32 %v1529, %v1530
    %v1532 = vsel %vm1490, %v1447, 0.0
    %v1533 = vadd.f32 %v1531, %v1532
    %v1534 = vsel %vm1490, %v1448, 0.0
    %v1535 = vadd.f32 %v1533, %v1534
    %v1536 = vsel %vm1490, %v1449, 0.0
    %v1537 = vadd.f32 %v1535, %v1536
    %v1538 = vsel %vm1490, %v1450, 0.0
    %v1539 = vadd.f32 %v1537, %v1538
    %v1540 = vsel %vm1490, %v1451, 0.0
    %v1541 = vadd.f32 %v1539, %v1540
    %v1542 = vsel %vm1490, %v1452, 0.0
    %v1543 = vadd.f32 %v1541, %v1542
    %v1544 = vsel %vm1490, %v1453, 0.0
    %v1545 = vadd.f32 %v1543, %v1544
    %v1546 = vsel %vm1490, %v1454, 0.0
    %v1547 = vadd.f32 %v1545, %v1546
    %v1548 = vsel %vm1490, %v1455, 0.0
    %v1549 = vadd.f32 %v1547, %v1548
    %v1550 = vsel %vm1490, %v1456, 0.0
    %v1551 = vadd.f32 %v1549, %v1550
    %v1552 = vsel %vm1490, %v1457, 0.0
    %v1553 = vadd.f32 %v1551, %v1552
    %v1554 = vsel %vm1490, %v1458, 0.0
    %v1555 = vadd.f32 %v1553, %v1554
    %v1556 = vsel %vm1490, %v1459, 0.0
    %v1557 = vadd.f32 %v1555, %v1556
    %v1558 = vsel %vm1490, %v1460, 0.0
    %v1559 = vadd.f32 %v1557, %v1558
    %v1560 = vsel %vm1490, %v1461, 0.0
    %v1561 = vadd.f32 %v1559, %v1560
    %v1562 = vsel %vm1490, %v1462, 0.0
    %v1563 = vadd.f32 %v1561, %v1562
    %v1564 = vsel %vm1490, %v1463, 0.0
    %v1565 = vadd.f32 %v1563, %v1564
    %v1566 = vsel %vm1490, %v1464, 0.0
    %v1567 = vadd.f32 %v1565, %v1566
    %v1568 = vsel %vm1490, %v1465, 0.0
    %v1569 = vadd.f32 %v1567, %v1568
    %v1570 = vsel %vm1490, %v1466, 0.0
    %v1571 = vadd.f32 %v1569, %v1570
    %v1572 = vsel %vm1490, %v1467, 0.0
    %v1573 = vadd.f32 %v1571, %v1572
    %v1574 = vsel %vm1490, %v1468, 0.0
    %v1575 = vadd.f32 %v1573, %v1574
    %v1576 = vsel %vm1490, %v1469, 0.0
    %v1577 = vadd.f32 %v1575, %v1576
    %v1578 = vsel %vm1490, %v1470, 0.0
    %v1579 = vadd.f32 %v1577, %v1578
    %v1580 = vsel %vm1490, %v1471, 0.0
    %v1581 = vadd.f32 %v1579, %v1580
    %v1582 = vsel %vm1490, %v1472, 0.0
    %v1583 = vadd.f32 %v1581, %v1582
    %v1584 = vsel %vm1490, %v1473, 0.0
    %v1585 = vadd.f32 %v1583, %v1584
    %v1586 = vsel %vm1490, %v1474, 0.0
    %v1587 = vadd.f32 %v1585, %v1586
    %v1588 = vsel %vm1490, %v1475, 0.0
    %v1589 = vadd.f32 %v1587, %v1588
    %v1590 = vsel %vm1490, %v1476, 0.0
    %v1591 = vadd.f32 %v1589, %v1590
    %v1592 = vsel %vm1490, %v1477, 0.0
    %v1593 = vadd.f32 %v1591, %v1592
    %v1594 = vsel %vm1490, %v1478, 0.0
    %v1595 = vadd.f32 %v1593, %v1594
    %v1596 = vsel %vm1490, %v1479, 0.0
    %v1597 = vadd.f32 %v1595, %v1596
    %v1598 = vsel %vm1490, %v1480, 0.0
    %v1599 = vadd.f32 %v1597, %v1598
    %v1600 = vsel %vm1490, %v1481, 0.0
    %v1601 = vadd.f32 %v1599, %v1600
    %v1602 = vsel %vm1490, %v1482, 0.0
    %v1603 = vadd.f32 %v1601, %v1602
    %v1604 = vsel %vm1490, %v1483, 0.0
    %v1605 = vadd.f32 %v1603, %v1604
    %v1606 = vsel %vm1490, %v1484, 0.0
    %v1607 = vadd.f32 %v1605, %v1606
    %v1608 = vsel %vm1490, %v1485, 0.0
    %v1609 = vadd.f32 %v1607, %v1608
    %v1610 = vsel %vm1490, %v1486, 0.0
    %v1611 = vadd.f32 %v1609, %v1610
    %v1612 = vsel %vm1490, %v1487, 0.0
    %v1613 = vadd.f32 %v1611, %v1612
    %v1614 = vsel %vm1490, %v1488, 0.0
    %v1615 = vadd.f32 %v1613, %v1614
    %v1616 = vsel %vm1490, %v1489, 0.0
    %v1617 = vadd.f32 %v1615, %v1616
    %1618 = vadd.xlane.f32.xlu0 %v1617
    %v1619 = vpop.xlane.xlu0 %1618
    %v1620 = vrot.slane %v1619, 4
    %v1621 = vadd.f32 %v1619, %v1620
    %v1622 = vrot.slane %v1621, 2
    %v1623 = vadd.f32 %v1621, %v1622
    %v1624 = vrot.slane %v1623, 1
    %v1625 = vadd.f32 %v1623, %v1624
    %s1626 = vtos %v1625
    %v1627 = vsub.f32 %v12, %v76
    %v1628 = vsub.f32 %v13, %v77
    %v1629 = vsub.f32 %v14, %v78
    %v1630 = vsub.f32 %v15, %v79
    %v1631 = vsub.f32 %v16, %v80
    %v1632 = vsub.f32 %v17, %v81
    %v1633 = vsub.f32 %v18, %v82
    %v1634 = vsub.f32 %v19, %v83
    %v1635 = vsub.f32 %v20, %v84
    %v1636 = vsub.f32 %v21, %v85
    %v1637 = vsub.f32 %v22, %v86
    %v1638 = vsub.f32 %v23, %v87
    %v1639 = vsub.f32 %v24, %v88
    %v1640 = vsub.f32 %v25, %v89
    %v1641 = vsub.f32 %v26, %v90
    %v1642 = vsub.f32 %v27, %v91
    %v1643 = vsub.f32 %v28, %v92
    %v1644 = vsub.f32 %v29, %v93
    %v1645 = vsub.f32 %v30, %v94
    %v1646 = vsub.f32 %v31, %v95
    %v1647 = vsub.f32 %v32, %v96
    %v1648 = vsub.f32 %v33, %v97
    %v1649 = vsub.f32 %v34, %v98
    %v1650 = vsub.f32 %v35, %v99
    %v1651 = vsub.f32 %v36, %v100
    %v1652 = vsub.f32 %v37, %v101
    %v1653 = vsub.f32 %v38, %v102
    %v1654 = vsub.f32 %v39, %v103
    %v1655 = vsub.f32 %v40, %v104
    %v1656 = vsub.f32 %v41, %v105
    %v1657 = vsub.f32 %v42, %v106
    %v1658 = vsub.f32 %v43, %v107
    %v1659 = vsub.f32 %v44, %v108
    %v1660 = vsub.f32 %v45, %v109
    %v1661 = vsub.f32 %v46, %v110
    %v1662 = vsub.f32 %v47, %v111
    %v1663 = vsub.f32 %v48, %v112
    %v1664 = vsub.f32 %v49, %v113
    %v1665 = vsub.f32 %v50, %v114
    %v1666 = vsub.f32 %v51, %v115
    %v1667 = vsub.f32 %v52, %v116
    %v1668 = vsub.f32 %v53, %v117
    %v1669 = vsub.f32 %v54, %v118
    %v1670 = vsub.f32 %v55, %v119
    %v1671 = vsub.f32 %v56, %v120
    %v1672 = vsub.f32 %v57, %v121
    %v1673 = vsub.f32 %v58, %v122
    %v1674 = vsub.f32 %v59, %v123
    %v1675 = vsub.f32 %v60, %v124
    %v1676 = vsub.f32 %v61, %v125
    %v1677 = vsub.f32 %v62, %v126
    %v1678 = vsub.f32 %v63, %v127
    %v1679 = vsub.f32 %v64, %v128
    %v1680 = vsub.f32 %v65, %v129
    %v1681 = vsub.f32 %v66, %v130
    %v1682 = vsub.f32 %v67, %v131
    %v1683 = vsub.f32 %v68, %v132
    %v1684 = vsub.f32 %v69, %v133
    %v1685 = vsub.f32 %v70, %v134
    %v1686 = vsub.f32 %v71, %v135
    %v1687 = vsub.f32 %v72, %v136
    %v1688 = vsub.f32 %v73, %v137
    %v1689 = vsub.f32 %v74, %v138
    %v1690 = vsub.f32 %v75, %v139
    %v1691 = vmul.f32 %v1627, %v1627
    %v1692 = vmul.f32 %v1628, %v1628
    %v1693 = vmul.f32 %v1629, %v1629
    %v1694 = vmul.f32 %v1630, %v1630
    %v1695 = vmul.f32 %v1631, %v1631
    %v1696 = vmul.f32 %v1632, %v1632
    %v1697 = vmul.f32 %v1633, %v1633
    %v1698 = vmul.f32 %v1634, %v1634
    %v1699 = vmul.f32 %v1635, %v1635
    %v1700 = vmul.f32 %v1636, %v1636
    %v1701 = vmul.f32 %v1637, %v1637
    %v1702 = vmul.f32 %v1638, %v1638
    %v1703 = vmul.f32 %v1639, %v1639
    %v1704 = vmul.f32 %v1640, %v1640
    %v1705 = vmul.f32 %v1641, %v1641
    %v1706 = vmul.f32 %v1642, %v1642
    %v1707 = vmul.f32 %v1643, %v1643
    %v1708 = vmul.f32 %v1644, %v1644
    %v1709 = vmul.f32 %v1645, %v1645
    %v1710 = vmul.f32 %v1646, %v1646
    %v1711 = vmul.f32 %v1647, %v1647
    %v1712 = vmul.f32 %v1648, %v1648
    %v1713 = vmul.f32 %v1649, %v1649
    %v1714 = vmul.f32 %v1650, %v1650
    %v1715 = vmul.f32 %v1651, %v1651
    %v1716 = vmul.f32 %v1652, %v1652
    %v1717 = vmul.f32 %v1653, %v1653
    %v1718 = vmul.f32 %v1654, %v1654
    %v1719 = vmul.f32 %v1655, %v1655
    %v1720 = vmul.f32 %v1656, %v1656
    %v1721 = vmul.f32 %v1657, %v1657
    %v1722 = vmul.f32 %v1658, %v1658
    %v1723 = vmul.f32 %v1659, %v1659
    %v1724 = vmul.f32 %v1660, %v1660
    %v1725 = vmul.f32 %v1661, %v1661
    %v1726 = vmul.f32 %v1662, %v1662
    %v1727 = vmul.f32 %v1663, %v1663
    %v1728 = vmul.f32 %v1664, %v1664
    %v1729 = vmul.f32 %v1665, %v1665
    %v1730 = vmul.f32 %v1666, %v1666
    %v1731 = vmul.f32 %v1667, %v1667
    %v1732 = vmul.f32 %v1668, %v1668
    %v1733 = vmul.f32 %v1669, %v1669
    %v1734 = vmul.f32 %v1670, %v1670
    %v1735 = vmul.f32 %v1671, %v1671
    %v1736 = vmul.f32 %v1672, %v1672
    %v1737 = vmul.f32 %v1673, %v1673
    %v1738 = vmul.f32 %v1674, %v1674
    %v1739 = vmul.f32 %v1675, %v1675
    %v1740 = vmul.f32 %v1676, %v1676
    %v1741 = vmul.f32 %v1677, %v1677
    %v1742 = vmul.f32 %v1678, %v1678
    %v1743 = vmul.f32 %v1679, %v1679
    %v1744 = vmul.f32 %v1680, %v1680
    %v1745 = vmul.f32 %v1681, %v1681
    %v1746 = vmul.f32 %v1682, %v1682
    %v1747 = vmul.f32 %v1683, %v1683
    %v1748 = vmul.f32 %v1684, %v1684
    %v1749 = vmul.f32 %v1685, %v1685
    %v1750 = vmul.f32 %v1686, %v1686
    %v1751 = vmul.f32 %v1687, %v1687
    %v1752 = vmul.f32 %v1688, %v1688
    %v1753 = vmul.f32 %v1689, %v1689
    %v1754 = vmul.f32 %v1690, %v1690
    %vm1755 = vcmask 23552
    %v1756 = vsel %vm1755, %v1691, 0.0
    %v1757 = vsel %vm1755, %v1692, 0.0
    %v1758 = vadd.f32 %v1756, %v1757
    %v1759 = vsel %vm1755, %v1693, 0.0
    %v1760 = vadd.f32 %v1758, %v1759
    %v1761 = vsel %vm1755, %v1694, 0.0
    %v1762 = vadd.f32 %v1760, %v1761
    %v1763 = vsel %vm1755, %v1695, 0.0
    %v1764 = vadd.f32 %v1762, %v1763
    %v1765 = vsel %vm1755, %v1696, 0.0
    %v1766 = vadd.f32 %v1764, %v1765
    %v1767 = vsel %vm1755, %v1697, 0.0
    %v1768 = vadd.f32 %v1766, %v1767
    %v1769 = vsel %vm1755, %v1698, 0.0
    %v1770 = vadd.f32 %v1768, %v1769
    %v1771 = vsel %vm1755, %v1699, 0.0
    %v1772 = vadd.f32 %v1770, %v1771
    %v1773 = vsel %vm1755, %v1700, 0.0
    %v1774 = vadd.f32 %v1772, %v1773
    %v1775 = vsel %vm1755, %v1701, 0.0
    %v1776 = vadd.f32 %v1774, %v1775
    %v1777 = vsel %vm1755, %v1702, 0.0
    %v1778 = vadd.f32 %v1776, %v1777
    %v1779 = vsel %vm1755, %v1703, 0.0
    %v1780 = vadd.f32 %v1778, %v1779
    %v1781 = vsel %vm1755, %v1704, 0.0
    %v1782 = vadd.f32 %v1780, %v1781
    %v1783 = vsel %vm1755, %v1705, 0.0
    %v1784 = vadd.f32 %v1782, %v1783
    %v1785 = vsel %vm1755, %v1706, 0.0
    %v1786 = vadd.f32 %v1784, %v1785
    %v1787 = vsel %vm1755, %v1707, 0.0
    %v1788 = vadd.f32 %v1786, %v1787
    %v1789 = vsel %vm1755, %v1708, 0.0
    %v1790 = vadd.f32 %v1788, %v1789
    %v1791 = vsel %vm1755, %v1709, 0.0
    %v1792 = vadd.f32 %v1790, %v1791
    %v1793 = vsel %vm1755, %v1710, 0.0
    %v1794 = vadd.f32 %v1792, %v1793
    %v1795 = vsel %vm1755, %v1711, 0.0
    %v1796 = vadd.f32 %v1794, %v1795
    %v1797 = vsel %vm1755, %v1712, 0.0
    %v1798 = vadd.f32 %v1796, %v1797
    %v1799 = vsel %vm1755, %v1713, 0.0
    %v1800 = vadd.f32 %v1798, %v1799
    %v1801 = vsel %vm1755, %v1714, 0.0
    %v1802 = vadd.f32 %v1800, %v1801
    %v1803 = vsel %vm1755, %v1715, 0.0
    %v1804 = vadd.f32 %v1802, %v1803
    %v1805 = vsel %vm1755, %v1716, 0.0
    %v1806 = vadd.f32 %v1804, %v1805
    %v1807 = vsel %vm1755, %v1717, 0.0
    %v1808 = vadd.f32 %v1806, %v1807
    %v1809 = vsel %vm1755, %v1718, 0.0
    %v1810 = vadd.f32 %v1808, %v1809
    %v1811 = vsel %vm1755, %v1719, 0.0
    %v1812 = vadd.f32 %v1810, %v1811
    %v1813 = vsel %vm1755, %v1720, 0.0
    %v1814 = vadd.f32 %v1812, %v1813
    %v1815 = vsel %vm1755, %v1721, 0.0
    %v1816 = vadd.f32 %v1814, %v1815
    %v1817 = vsel %vm1755, %v1722, 0.0
    %v1818 = vadd.f32 %v1816, %v1817
    %v1819 = vsel %vm1755, %v1723, 0.0
    %v1820 = vadd.f32 %v1818, %v1819
    %v1821 = vsel %vm1755, %v1724, 0.0
    %v1822 = vadd.f32 %v1820, %v1821
    %v1823 = vsel %vm1755, %v1725, 0.0
    %v1824 = vadd.f32 %v1822, %v1823
    %v1825 = vsel %vm1755, %v1726, 0.0
    %v1826 = vadd.f32 %v1824, %v1825
    %v1827 = vsel %vm1755, %v1727, 0.0
    %v1828 = vadd.f32 %v1826, %v1827
    %v1829 = vsel %vm1755, %v1728, 0.0
    %v1830 = vadd.f32 %v1828, %v1829
    %v1831 = vsel %vm1755, %v1729, 0.0
    %v1832 = vadd.f32 %v1830, %v1831
    %v1833 = vsel %vm1755, %v1730, 0.0
    %v1834 = vadd.f32 %v1832, %v1833
    %v1835 = vsel %vm1755, %v1731, 0.0
    %v1836 = vadd.f32 %v1834, %v1835
    %v1837 = vsel %vm1755, %v1732, 0.0
    %v1838 = vadd.f32 %v1836, %v1837
    %v1839 = vsel %vm1755, %v1733, 0.0
    %v1840 = vadd.f32 %v1838, %v1839
    %v1841 = vsel %vm1755, %v1734, 0.0
    %v1842 = vadd.f32 %v1840, %v1841
    %v1843 = vsel %vm1755, %v1735, 0.0
    %v1844 = vadd.f32 %v1842, %v1843
    %v1845 = vsel %vm1755, %v1736, 0.0
    %v1846 = vadd.f32 %v1844, %v1845
    %v1847 = vsel %vm1755, %v1737, 0.0
    %v1848 = vadd.f32 %v1846, %v1847
    %v1849 = vsel %vm1755, %v1738, 0.0
    %v1850 = vadd.f32 %v1848, %v1849
    %v1851 = vsel %vm1755, %v1739, 0.0
    %v1852 = vadd.f32 %v1850, %v1851
    %v1853 = vsel %vm1755, %v1740, 0.0
    %v1854 = vadd.f32 %v1852, %v1853
    %v1855 = vsel %vm1755, %v1741, 0.0
    %v1856 = vadd.f32 %v1854, %v1855
    %v1857 = vsel %vm1755, %v1742, 0.0
    %v1858 = vadd.f32 %v1856, %v1857
    %v1859 = vsel %vm1755, %v1743, 0.0
    %v1860 = vadd.f32 %v1858, %v1859
    %v1861 = vsel %vm1755, %v1744, 0.0
    %v1862 = vadd.f32 %v1860, %v1861
    %v1863 = vsel %vm1755, %v1745, 0.0
    %v1864 = vadd.f32 %v1862, %v1863
    %v1865 = vsel %vm1755, %v1746, 0.0
    %v1866 = vadd.f32 %v1864, %v1865
    %v1867 = vsel %vm1755, %v1747, 0.0
    %v1868 = vadd.f32 %v1866, %v1867
    %v1869 = vsel %vm1755, %v1748, 0.0
    %v1870 = vadd.f32 %v1868, %v1869
    %v1871 = vsel %vm1755, %v1749, 0.0
    %v1872 = vadd.f32 %v1870, %v1871
    %v1873 = vsel %vm1755, %v1750, 0.0
    %v1874 = vadd.f32 %v1872, %v1873
    %v1875 = vsel %vm1755, %v1751, 0.0
    %v1876 = vadd.f32 %v1874, %v1875
    %v1877 = vsel %vm1755, %v1752, 0.0
    %v1878 = vadd.f32 %v1876, %v1877
    %v1879 = vsel %vm1755, %v1753, 0.0
    %v1880 = vadd.f32 %v1878, %v1879
    %v1881 = vsel %vm1755, %v1754, 0.0
    %v1882 = vadd.f32 %v1880, %v1881
    %1883 = vadd.xlane.f32.xlu0 %v1882
    %v1884 = vpop.xlane.xlu0 %1883
    %v1885 = vrot.slane %v1884, 4
    %v1886 = vadd.f32 %v1884, %v1885
    %v1887 = vrot.slane %v1886, 2
    %v1888 = vadd.f32 %v1886, %v1887
    %v1889 = vrot.slane %v1888, 1
    %v1890 = vadd.f32 %v1888, %v1889
    %s1891 = vtos %v1890
    %s1892 = smul.f32 %s1626, 3.0517578e-05
    %s1893 = smul.f32 %s1891, 0.0006510417
    %s1894 = sadd.f32 %s1892, %s1893
    %v1895 = vstv %s1894
    %vm1896 = vcmask 0
    %1897 = vst.msk [vmem:[#allocation2] sm:$0x1] %vm1896, %v1895
    // Predicated region
    $region10: #{combined_loss.1} parent=1 // pred_check
      _
    $region11: #{combined_loss.1} parent=1 // pred_check_branch
      %1899 = sbr.rel (0) target = $region13
    $region12: #{combined_loss.1} parent=1 // pred_region
      %s1901 = ssub.s32 16, 16
      %1902 = vsyncadd [#allocation3], %s1901
      %s1904 = sshll.u32 [#allocation2], 4
      %s1905 = int_to_ptr.vmem [resolvable:$true] %s1904
      %1907 = dma.vmem_to_hbm [thread:$0]  %s1905, 16, %s2, [#allocation3]
    $region13: #{combined_loss.1} parent=1 // pred_fallthru
      _
    // Predicated region
    $region14: #{combined_loss.1} parent=1 // pred_check
      _
    $region15: #{combined_loss.1} parent=1 // pred_check_branch
      %1909 = sbr.rel (0) target = $region17
    $region16: #{combined_loss.1} parent=1 // pred_region
      %1910 = dma.done [#allocation3], 16
    $region17: #{combined_loss.1} parent=1 // pred_fallthru
      _
    %1911 = vsyncpa [#allocation3], 1

</llo_original>
